<compile_context>
chip_gen: v7x
topology: tpu7x:2x2x1
jax: 0.10.0
libtpu: 0.0.40
codegen_flags: <defaults>
</compile_context>

<pallas_src>
from functools import partial

import jax
import jax.numpy as jnp
from jax import lax
from jax.experimental import pallas as pl
from jax.experimental.pallas import tpu as pltpu


def mbconv_kernel(
    x_ref,        # (Cin, HWb)        f32, HWb = n_img * H * W
    w_exp_ref,    # (Cexp, Cin)       matmul dtype, BN1 scale folded in
    b1_ref,       # (Cexp, 1)         f32
    w_dw_ref,     # (k*k, Cexp, 1)    f32, depthwise weight * BN2 scale per tap
    mask_ref,     # (k*k, 1, HWb)     f32, image-border mask per tap (tiled per image)
    b2_ref,       # (Cexp, 1)         f32
    w_se1_ref,    # (Cexp, Cse)       f32
    b_se1_ref,    # (1, Cse)          f32
    w_se2_ref,    # (Cexp, Cse)       f32 (transposed: output channels on sublanes)
    b_se2_ref,    # (Cexp, 1)         f32
    w_proj_ref,   # (Cout, Cexp)      matmul dtype, BN3 scale folded in
    b3_ref,       # (Cout, 1)         f32
    o_ref,        # (Cout, HWb)       f32
    *, ksize, H, W, n_img, add_skip,
):
    HW = H * W
    HWb = n_img * HW
    p = ksize // 2
    center = p * ksize + p
    mm_dtype = w_exp_ref.dtype           # bf16 at real sizes, f32 at demo size

    x = x_ref[...]                                                # (Cin, HWb), f32

    # ---- expansion: 1x1 conv == matmul (BN scale pre-folded), bias, Swish ----
    h = jnp.dot(w_exp_ref[...], x.astype(mm_dtype),
                preferred_element_type=jnp.float32)
    h = h + b1_ref[...]
    h = h * jax.nn.sigmoid(h)

    # ---- depthwise kxk conv, stride 1, SAME padding ----
    # Each tap is a static XLU lane-roll of the flat (y*W + x) axis.  Row wrap,
    # image-border zeroing, and cross-image wrap of the roll are all handled by
    # the precomputed per-tap masks.  The centre tap (shift 0, all-ones mask)
    # initialises the accumulator -- no zeros plane, one fewer vadd per element.
    acc = h * w_dw_ref[center]
    for dy in range(ksize):
        for dx in range(ksize):
            tap = dy * ksize + dx
            if tap == center:
                continue
            s = (dy - p) * W + (dx - p)                 # flat offset of this tap
            shifted = pltpu.roll(h, shift=(-s) % HWb, axis=1)
            acc = acc + (shifted * w_dw_ref[tap]) * mask_ref[tap]
    h = acc + b2_ref[...]
    h = h * jax.nn.sigmoid(h)

    # ---- squeeze & excitation (per image; tiny, broadcast-mul + reductions) ----
    w_se1 = w_se1_ref[...]
    b_se1 = b_se1_ref[...]
    w_se2 = w_se2_ref[...]
    b_se2 = b_se2_ref[...]
    pieces = []
    for n in range(n_img):                               # static Python loop
        hn = h[:, n * HW:(n + 1) * HW]                   # 128-aligned static lane slice
        se = jnp.mean(hn, axis=1, keepdims=True)                              # (Cexp, 1)
        s1 = jnp.sum(w_se1 * se, axis=0, keepdims=True) + b_se1               # (1, Cse)
        s1 = s1 * jax.nn.sigmoid(s1)                                          # Swish
        gate = jnp.sum(w_se2 * s1, axis=1, keepdims=True) + b_se2             # (Cexp, 1)
        gate = jax.nn.sigmoid(gate)
        pieces.append(hn * gate)                                              # channel re-scale
    h = pieces[0] if n_img == 1 else jnp.concatenate(pieces, axis=1)

    # ---- projection: 1x1 conv (BN scale pre-folded) + bias ----
    out = jnp.dot(w_proj_ref[...], h.astype(mm_dtype),
                  preferred_element_type=jnp.float32)
    out = out + b3_ref[...]

    if add_skip:                                        # static (Python) branch
        out = out + x                                   # residual stays f32

    o_ref[...] = out.astype(o_ref.dtype)                # HWb-wide (mult. of 128): unmasked stores


def _invariant_spec(shape, n_blocks):
    """Full-array block, constant index_map; single-buffered when the grid has >1 step."""
    nd = len(shape)
    kwargs = {}
    if n_blocks > 1:
        kwargs["pipeline_mode"] = pl.Buffered(1)        # constants: no double-buffering
    return pl.BlockSpec(shape, lambda i, _nd=nd: (0,) * _nd, **kwargs)


def mbconv_forward(x_nchw, params, *, ksize, stride, add_skip,
                   images_per_block=None, matmul_dtype=jnp.float32):
    assert stride == 1, "demo config uses stride=1"
    N, Cin, H, W = x_nchw.shape
    HW = H * W
    Cexp = params["w_exp"].shape[1]
    Cse = params["w_se1"].shape[1]
    Cout = params["w_proj"].shape[1]
    if add_skip:
        assert Cin == Cout
    p = ksize // 2

    if images_per_block is None:
        images_per_block = N            # single grid step: best on single-TC v5e/v6e
    assert N % images_per_block == 0
    n_blocks = N // images_per_block    # set images_per_block=N//2 on v7x -> both TCs busy
    HWb = images_per_block * HW

    # ---- fold the batch onto the lane axis: (Cin, N*HW) ----
    x = jnp.transpose(x_nchw.reshape(N, Cin, HW), (1, 0, 2)).reshape(Cin, N * HW)

    # ---- one-time param prep (host/XLA): fold BN scales into conv weights,
    #      channels on sublanes, DECOMPOSED per-tap depthwise weights & masks ----
    w_exp_k = (params["w_exp"] * params["bn1_s"]).T.astype(matmul_dtype)   # (Cexp, Cin)
    b1_k = params["bn1_b"].T                                               # (Cexp, 1)
    w_dw_k = (params["w_dw"] * params["bn2_s"])[:, :, None]                # (k*k, Cexp, 1)
    b2_k = params["bn2_b"].T                                               # (Cexp, 1)

    ys, xs = jnp.meshgrid(jnp.arange(H), jnp.arange(W), indexing="ij")
    masks = []
    for dy in range(ksize):
        for dx in range(ksize):
            oy, ox = dy - p, dx - p
            m = (ys + oy >= 0) & (ys + oy < H) & (xs + ox >= 0) & (xs + ox < W)
            masks.append(m.reshape(HW))
    mask = jnp.stack(masks).astype(jnp.float32)                 # (k*k, HW)  image-border masks
    mask = jnp.tile(mask, (1, images_per_block))[:, None, :]    # (k*k, 1, HWb) tiled per image

    w_se1_k = params["w_se1"]                                   # (Cexp, Cse)
    b_se1_k = params["b_se1"]                                   # (1, Cse)
    w_se2_k = params["w_se2"].T                                 # (Cexp, Cse)
    b_se2_k = params["b_se2"].T                                 # (Cexp, 1)
    w_proj_k = (params["w_proj"] * params["bn3_s"]).T.astype(matmul_dtype)  # (Cout, Cexp)
    b3_k = params["bn3_b"].T                                    # (Cout, 1)

    inv = partial(_invariant_spec, n_blocks=n_blocks)

    out = pl.pallas_call(
        partial(mbconv_kernel, ksize=ksize, H=H, W=W,
                n_img=images_per_block, add_skip=add_skip),
        out_shape=jax.ShapeDtypeStruct((Cout, N * HW), jnp.float32),
        grid_spec=pltpu.PrefetchScalarGridSpec(
            num_scalar_prefetch=0,
            grid=(n_blocks,),
            in_specs=[
                pl.BlockSpec((Cin, HWb), lambda i: (0, i)),
                inv((Cexp, Cin)), inv((Cexp, 1)),
                inv((ksize * ksize, Cexp, 1)),
                inv((ksize * ksize, 1, HWb)),
                inv((Cexp, 1)),
                inv((Cexp, Cse)), inv((1, Cse)),
                inv((Cexp, Cse)), inv((Cexp, 1)),
                inv((Cout, Cexp)), inv((Cout, 1)),
            ],
            out_specs=pl.BlockSpec((Cout, HWb), lambda i: (0, i)),
        ),
        compiler_params=pltpu.CompilerParams(dimension_semantics=("parallel",)),
    )(
        x,
        w_exp_k, b1_k,
        w_dw_k, mask, b2_k,
        w_se1_k, b_se1_k, w_se2_k, b_se2_k,
        w_proj_k, b3_k,
    )
    # (Cout, N*HW) -> NCHW
    return jnp.transpose(out.reshape(Cout, N, HW), (1, 0, 2)).reshape(N, Cout, H, W)


def reference_nhwc(x, prm, *, ksize, add_skip):
    """Pure-JAX reference (independent depthwise conv via lax.conv)."""
    Cexp = prm["w_exp"].shape[1]
    h = jnp.einsum("nhwc,cd->nhwd", x, prm["w_exp"])
    h = h * prm["bn1_s"] + prm["bn1_b"]
    h = h * jax.nn.sigmoid(h)
    w_dw = prm["w_dw"].reshape(ksize, ksize, Cexp)[:, :, None, :]   # HWIO, I=1
    h = lax.conv_general_dilated(
        h, w_dw, window_strides=(1, 1),
        padding=[(ksize // 2, ksize // 2)] * 2,
        dimension_numbers=("NHWC", "HWIO", "NHWC"),
        feature_group_count=Cexp,
    )
    h = h * prm["bn2_s"] + prm["bn2_b"]
    h = h * jax.nn.sigmoid(h)
    se = jnp.mean(h, axis=(1, 2), keepdims=True)
    se = jnp.einsum("nhwc,cd->nhwd", se, prm["w_se1"]) + prm["b_se1"]
    se = se * jax.nn.sigmoid(se)
    se = jnp.einsum("nhwc,cd->nhwd", se, prm["w_se2"]) + prm["b_se2"]
    se = jax.nn.sigmoid(se)
    h = h * se
    out = jnp.einsum("nhwc,cd->nhwd", h, prm["w_proj"])
    out = out * prm["bn3_s"] + prm["bn3_b"]
    if add_skip:
        out = out + x
    return out


def make_params(key, Cin, Cout, Cexp, Cse, ksize, eps=1e-3):
    ks = jax.random.split(key, 20)
    nrm = lambda k, s, sc: sc * jax.random.normal(k, s, jnp.float32)

    def bn_fold(kg, kb, km, kv, C):
        gamma = 1.0 + 0.1 * jax.random.normal(kg, (C,), jnp.float32)
        beta = 0.1 * jax.random.normal(kb, (C,), jnp.float32)
        mean = 0.1 * jax.random.normal(km, (C,), jnp.float32)
        var = 1.0 + 0.1 * jnp.abs(jax.random.normal(kv, (C,), jnp.float32))
        s = gamma / jnp.sqrt(var + eps)
        return s[None, :], (beta - mean * s)[None, :]

    bn1_s, bn1_b = bn_fold(ks[0], ks[1], ks[2], ks[3], Cexp)
    bn2_s, bn2_b = bn_fold(ks[4], ks[5], ks[6], ks[7], Cexp)
    bn3_s, bn3_b = bn_fold(ks[8], ks[9], ks[10], ks[11], Cout)
    return dict(
        w_exp=nrm(ks[12], (Cin, Cexp), 0.2),
        bn1_s=bn1_s, bn1_b=bn1_b,
        w_dw=nrm(ks[13], (ksize * ksize, Cexp), 0.2),
        bn2_s=bn2_s, bn2_b=bn2_b,
        w_se1=nrm(ks[14], (Cexp, Cse), 0.3),
        b_se1=nrm(ks[15], (1, Cse), 0.1),
        w_se2=nrm(ks[16], (Cse, Cexp), 0.3),
        b_se2=nrm(ks[17], (1, Cexp), 0.1),
        w_proj=nrm(ks[18], (Cexp, Cout), 0.2),
        bn3_s=bn3_s, bn3_b=bn3_b,
    )


if __name__ == "__main__":
    # MBConv(inplanes=8, planes=8, kernel_size=3, stride=1, expand_rate=2.0,
    #        se_rate=0.25) in eval mode.
    N, Cin, H, W = 2, 8, 16, 16
    planes, ksize, stride = 8, 3, 1
    expand_rate, se_rate = 2.0, 0.25
    Cexp = int(Cin * expand_rate)               # 16
    Cse = max(1, int(Cin * se_rate))            # 2
    add_skip = (stride == 1) and (planes == Cin)

    key = jax.random.PRNGKey(0)
    kx, kp = jax.random.split(key)
    x_nchw = jax.random.normal(kx, (N, Cin, H, W), jnp.float32)
    params = make_params(kp, Cin, planes, Cexp, Cse, ksize)

    # independent pure-JAX reference
    x_nhwc = jnp.transpose(x_nchw, (0, 2, 3, 1))
    ref = reference_nhwc(x_nhwc, params, ksize=ksize, add_skip=add_skip)
    ref_nchw = jnp.transpose(ref, (0, 3, 1, 2))

    # ---- f32 matmul-operand path (strict check) ----
    out = mbconv_forward(x_nchw, params, ksize=ksize, stride=stride,
                         add_skip=add_skip)
    out = jax.block_until_ready(out)
    assert out.shape == (N, planes, H, W)
    assert jnp.allclose(out, ref_nchw, atol=1e-4, rtol=1e-4), (
        float(jnp.max(jnp.abs(out - ref_nchw))))

    # ---- bf16 MXU-operand path (f32 accumulate); tolerance loosened for bf16 rounding ----
    out_bf = mbconv_forward(x_nchw, params, ksize=ksize, stride=stride,
                            add_skip=add_skip, matmul_dtype=jnp.bfloat16)
    out_bf = jax.block_until_ready(out_bf)
    assert out_bf.shape == (N, planes, H, W)
    assert jnp.allclose(out_bf, ref_nchw, atol=2e-1, rtol=1e-1), (
        float(jnp.max(jnp.abs(out_bf - ref_nchw))))

    print("KERNEL_OK")
</pallas_src>

<mosaic_0001>
module attributes {stable_mosaic.version = 11 : i64} {
  func.func @mbconv_kernel(%arg0: i32, %arg1: memref<8x512xf32, #tpu.memory_space<vmem>>, %arg2: memref<16x8xf32, #tpu.memory_space<vmem>>, %arg3: memref<16x1xf32, #tpu.memory_space<vmem>>, %arg4: memref<9x16x1xf32, #tpu.memory_space<vmem>>, %arg5: memref<9x1x512xf32, #tpu.memory_space<vmem>>, %arg6: memref<16x1xf32, #tpu.memory_space<vmem>>, %arg7: memref<16x2xf32, #tpu.memory_space<vmem>>, %arg8: memref<1x2xf32, #tpu.memory_space<vmem>>, %arg9: memref<16x2xf32, #tpu.memory_space<vmem>>, %arg10: memref<16x1xf32, #tpu.memory_space<vmem>>, %arg11: memref<8x16xf32, #tpu.memory_space<vmem>>, %arg12: memref<8x1xf32, #tpu.memory_space<vmem>>, %arg13: memref<8x512xf32, #tpu.memory_space<vmem>>) attributes {dimension_semantics = [#tpu.dimension_semantics<parallel>], iteration_bounds = array<i64: 1>, scalar_prefetch = 0 : i64, scratch_operands = 0 : i64, tpu.core_type = #tpu.core_type<tc>, window_params = [{transform_indices = @transform_0, window_bounds = array<i64: 8, 512>}, {pipeline_mode = #tpu.pipeline_mode<synchronous>, transform_indices = @transform_1, window_bounds = array<i64: 16, 8>}, {pipeline_mode = #tpu.pipeline_mode<synchronous>, transform_indices = @transform_2, window_bounds = array<i64: 16, 1>}, {pipeline_mode = #tpu.pipeline_mode<synchronous>, transform_indices = @transform_3, window_bounds = array<i64: 9, 16, 1>}, {pipeline_mode = #tpu.pipeline_mode<synchronous>, transform_indices = @transform_4, window_bounds = array<i64: 9, 1, 512>}, {pipeline_mode = #tpu.pipeline_mode<synchronous>, transform_indices = @transform_5, window_bounds = array<i64: 16, 1>}, {pipeline_mode = #tpu.pipeline_mode<synchronous>, transform_indices = @transform_6, window_bounds = array<i64: 16, 2>}, {pipeline_mode = #tpu.pipeline_mode<synchronous>, transform_indices = @transform_7, window_bounds = array<i64: 1, 2>}, {pipeline_mode = #tpu.pipeline_mode<synchronous>, transform_indices = @transform_8, window_bounds = array<i64: 16, 2>}, {pipeline_mode = #tpu.pipeline_mode<synchronous>, transform_indices = @transform_9, window_bounds = array<i64: 16, 1>}, {pipeline_mode = #tpu.pipeline_mode<synchronous>, transform_indices = @transform_10, window_bounds = array<i64: 8, 16>}, {pipeline_mode = #tpu.pipeline_mode<synchronous>, transform_indices = @transform_11, window_bounds = array<i64: 8, 1>}, {transform_indices = @transform_12, window_bounds = array<i64: 8, 512>}]} {
    %c0 = arith.constant 0 : index
    %c0_0 = arith.constant 0 : index
    %0 = vector.load %arg1[%c0, %c0_0] : memref<8x512xf32, #tpu.memory_space<vmem>>, vector<8x512xf32>
    %c0_1 = arith.constant 0 : index
    %c0_2 = arith.constant 0 : index
    %1 = vector.load %arg2[%c0_1, %c0_2] : memref<16x8xf32, #tpu.memory_space<vmem>>, vector<16x8xf32>
    %cst = arith.constant dense<0.000000e+00> : vector<16x512xf32>
    %2 = tpu.matmul %1, %0, %cst {dimension_numbers = #tpu.dot_dimension_numbers<[1], [0], [0], [1], [0, 0, 1, 1], [], []>} : vector<16x8xf32>, vector<8x512xf32>, vector<16x512xf32> -> vector<16x512xf32>
    %c0_3 = arith.constant 0 : index
    %c0_4 = arith.constant 0 : index
    %3 = vector.load %arg3[%c0_3, %c0_4] : memref<16x1xf32, #tpu.memory_space<vmem>>, vector<16x1xf32>
    %4 = vector.broadcast %3 : vector<16x1xf32> to vector<16x512xf32>
    %5 = arith.addf %2, %4 : vector<16x512xf32>
    %6 = arith.negf %5 : vector<16x512xf32>
    %7 = math.exp %6 : vector<16x512xf32>
    %cst_5 = arith.constant 1.000000e+00 : f32
    %8 = vector.broadcast %cst_5 : f32 to vector<16x512xf32>
    %9 = arith.addf %8, %7 : vector<16x512xf32>
    %10 = arith.divf %8, %9 : vector<16x512xf32>
    %11 = arith.mulf %5, %10 : vector<16x512xf32>
    %c4 = arith.constant 4 : index
    %c0_6 = arith.constant 0 : index
    %c0_7 = arith.constant 0 : index
    %12 = vector.load %arg4[%c4, %c0_6, %c0_7] : memref<9x16x1xf32, #tpu.memory_space<vmem>>, vector<1x16x1xf32>
    %13 = vector.shape_cast %12 : vector<1x16x1xf32> to vector<16x1xf32>
    %14 = vector.broadcast %13 : vector<16x1xf32> to vector<16x512xf32>
    %15 = arith.mulf %11, %14 : vector<16x512xf32>
    %c17_i32 = arith.constant 17 : i32
    %16 = tpu.dynamic_rotate %11 by %c17_i32 dim 1 : vector<16x512xf32>, i32 -> vector<16x512xf32>
    %c0_8 = arith.constant 0 : index
    %c0_9 = arith.constant 0 : index
    %c0_10 = arith.constant 0 : index
    %17 = vector.load %arg4[%c0_8, %c0_9, %c0_10] : memref<9x16x1xf32, #tpu.memory_space<vmem>>, vector<1x16x1xf32>
    %18 = vector.shape_cast %17 : vector<1x16x1xf32> to vector<16x1xf32>
    %19 = vector.broadcast %18 : vector<16x1xf32> to vector<16x512xf32>
    %20 = arith.mulf %16, %19 : vector<16x512xf32>
    %c0_11 = arith.constant 0 : index
    %c0_12 = arith.constant 0 : index
    %c0_13 = arith.constant 0 : index
    %21 = vector.load %arg5[%c0_11, %c0_12, %c0_13] : memref<9x1x512xf32, #tpu.memory_space<vmem>>, vector<1x1x512xf32>
    %22 = vector.shape_cast %21 : vector<1x1x512xf32> to vector<1x512xf32>
    %23 = vector.broadcast %22 : vector<1x512xf32> to vector<16x512xf32>
    %24 = arith.mulf %20, %23 : vector<16x512xf32>
    %25 = arith.addf %15, %24 : vector<16x512xf32>
    %c16_i32 = arith.constant 16 : i32
    %26 = tpu.dynamic_rotate %11 by %c16_i32 dim 1 : vector<16x512xf32>, i32 -> vector<16x512xf32>
    %c1 = arith.constant 1 : index
    %c0_14 = arith.constant 0 : index
    %c0_15 = arith.constant 0 : index
    %27 = vector.load %arg4[%c1, %c0_14, %c0_15] : memref<9x16x1xf32, #tpu.memory_space<vmem>>, vector<1x16x1xf32>
    %28 = vector.shape_cast %27 : vector<1x16x1xf32> to vector<16x1xf32>
    %29 = vector.broadcast %28 : vector<16x1xf32> to vector<16x512xf32>
    %30 = arith.mulf %26, %29 : vector<16x512xf32>
    %c1_16 = arith.constant 1 : index
    %c0_17 = arith.constant 0 : index
    %c0_18 = arith.constant 0 : index
    %31 = vector.load %arg5[%c1_16, %c0_17, %c0_18] : memref<9x1x512xf32, #tpu.memory_space<vmem>>, vector<1x1x512xf32>
    %32 = vector.shape_cast %31 : vector<1x1x512xf32> to vector<1x512xf32>
    %33 = vector.broadcast %32 : vector<1x512xf32> to vector<16x512xf32>
    %34 = arith.mulf %30, %33 : vector<16x512xf32>
    %35 = arith.addf %25, %34 : vector<16x512xf32>
    %c15_i32 = arith.constant 15 : i32
    %36 = tpu.dynamic_rotate %11 by %c15_i32 dim 1 : vector<16x512xf32>, i32 -> vector<16x512xf32>
    %c2 = arith.constant 2 : index
    %c0_19 = arith.constant 0 : index
    %c0_20 = arith.constant 0 : index
    %37 = vector.load %arg4[%c2, %c0_19, %c0_20] : memref<9x16x1xf32, #tpu.memory_space<vmem>>, vector<1x16x1xf32>
    %38 = vector.shape_cast %37 : vector<1x16x1xf32> to vector<16x1xf32>
    %39 = vector.broadcast %38 : vector<16x1xf32> to vector<16x512xf32>
    %40 = arith.mulf %36, %39 : vector<16x512xf32>
    %c2_21 = arith.constant 2 : index
    %c0_22 = arith.constant 0 : index
    %c0_23 = arith.constant 0 : index
    %41 = vector.load %arg5[%c2_21, %c0_22, %c0_23] : memref<9x1x512xf32, #tpu.memory_space<vmem>>, vector<1x1x512xf32>
    %42 = vector.shape_cast %41 : vector<1x1x512xf32> to vector<1x512xf32>
    %43 = vector.broadcast %42 : vector<1x512xf32> to vector<16x512xf32>
    %44 = arith.mulf %40, %43 : vector<16x512xf32>
    %45 = arith.addf %35, %44 : vector<16x512xf32>
    %c1_i32 = arith.constant 1 : i32
    %46 = tpu.dynamic_rotate %11 by %c1_i32 dim 1 : vector<16x512xf32>, i32 -> vector<16x512xf32>
    %c3 = arith.constant 3 : index
    %c0_24 = arith.constant 0 : index
    %c0_25 = arith.constant 0 : index
    %47 = vector.load %arg4[%c3, %c0_24, %c0_25] : memref<9x16x1xf32, #tpu.memory_space<vmem>>, vector<1x16x1xf32>
    %48 = vector.shape_cast %47 : vector<1x16x1xf32> to vector<16x1xf32>
    %49 = vector.broadcast %48 : vector<16x1xf32> to vector<16x512xf32>
    %50 = arith.mulf %46, %49 : vector<16x512xf32>
    %c3_26 = arith.constant 3 : index
    %c0_27 = arith.constant 0 : index
    %c0_28 = arith.constant 0 : index
    %51 = vector.load %arg5[%c3_26, %c0_27, %c0_28] : memref<9x1x512xf32, #tpu.memory_space<vmem>>, vector<1x1x512xf32>
    %52 = vector.shape_cast %51 : vector<1x1x512xf32> to vector<1x512xf32>
    %53 = vector.broadcast %52 : vector<1x512xf32> to vector<16x512xf32>
    %54 = arith.mulf %50, %53 : vector<16x512xf32>
    %55 = arith.addf %45, %54 : vector<16x512xf32>
    %c511_i32 = arith.constant 511 : i32
    %56 = tpu.dynamic_rotate %11 by %c511_i32 dim 1 : vector<16x512xf32>, i32 -> vector<16x512xf32>
    %c5 = arith.constant 5 : index
    %c0_29 = arith.constant 0 : index
    %c0_30 = arith.constant 0 : index
    %57 = vector.load %arg4[%c5, %c0_29, %c0_30] : memref<9x16x1xf32, #tpu.memory_space<vmem>>, vector<1x16x1xf32>
    %58 = vector.shape_cast %57 : vector<1x16x1xf32> to vector<16x1xf32>
    %59 = vector.broadcast %58 : vector<16x1xf32> to vector<16x512xf32>
    %60 = arith.mulf %56, %59 : vector<16x512xf32>
    %c5_31 = arith.constant 5 : index
    %c0_32 = arith.constant 0 : index
    %c0_33 = arith.constant 0 : index
    %61 = vector.load %arg5[%c5_31, %c0_32, %c0_33] : memref<9x1x512xf32, #tpu.memory_space<vmem>>, vector<1x1x512xf32>
    %62 = vector.shape_cast %61 : vector<1x1x512xf32> to vector<1x512xf32>
    %63 = vector.broadcast %62 : vector<1x512xf32> to vector<16x512xf32>
    %64 = arith.mulf %60, %63 : vector<16x512xf32>
    %65 = arith.addf %55, %64 : vector<16x512xf32>
    %c497_i32 = arith.constant 497 : i32
    %66 = tpu.dynamic_rotate %11 by %c497_i32 dim 1 : vector<16x512xf32>, i32 -> vector<16x512xf32>
    %c6 = arith.constant 6 : index
    %c0_34 = arith.constant 0 : index
    %c0_35 = arith.constant 0 : index
    %67 = vector.load %arg4[%c6, %c0_34, %c0_35] : memref<9x16x1xf32, #tpu.memory_space<vmem>>, vector<1x16x1xf32>
    %68 = vector.shape_cast %67 : vector<1x16x1xf32> to vector<16x1xf32>
    %69 = vector.broadcast %68 : vector<16x1xf32> to vector<16x512xf32>
    %70 = arith.mulf %66, %69 : vector<16x512xf32>
    %c6_36 = arith.constant 6 : index
    %c0_37 = arith.constant 0 : index
    %c0_38 = arith.constant 0 : index
    %71 = vector.load %arg5[%c6_36, %c0_37, %c0_38] : memref<9x1x512xf32, #tpu.memory_space<vmem>>, vector<1x1x512xf32>
    %72 = vector.shape_cast %71 : vector<1x1x512xf32> to vector<1x512xf32>
    %73 = vector.broadcast %72 : vector<1x512xf32> to vector<16x512xf32>
    %74 = arith.mulf %70, %73 : vector<16x512xf32>
    %75 = arith.addf %65, %74 : vector<16x512xf32>
    %c496_i32 = arith.constant 496 : i32
    %76 = tpu.dynamic_rotate %11 by %c496_i32 dim 1 : vector<16x512xf32>, i32 -> vector<16x512xf32>
    %c7 = arith.constant 7 : index
    %c0_39 = arith.constant 0 : index
    %c0_40 = arith.constant 0 : index
    %77 = vector.load %arg4[%c7, %c0_39, %c0_40] : memref<9x16x1xf32, #tpu.memory_space<vmem>>, vector<1x16x1xf32>
    %78 = vector.shape_cast %77 : vector<1x16x1xf32> to vector<16x1xf32>
    %79 = vector.broadcast %78 : vector<16x1xf32> to vector<16x512xf32>
    %80 = arith.mulf %76, %79 : vector<16x512xf32>
    %c7_41 = arith.constant 7 : index
    %c0_42 = arith.constant 0 : index
    %c0_43 = arith.constant 0 : index
    %81 = vector.load %arg5[%c7_41, %c0_42, %c0_43] : memref<9x1x512xf32, #tpu.memory_space<vmem>>, vector<1x1x512xf32>
    %82 = vector.shape_cast %81 : vector<1x1x512xf32> to vector<1x512xf32>
    %83 = vector.broadcast %82 : vector<1x512xf32> to vector<16x512xf32>
    %84 = arith.mulf %80, %83 : vector<16x512xf32>
    %85 = arith.addf %75, %84 : vector<16x512xf32>
    %c495_i32 = arith.constant 495 : i32
    %86 = tpu.dynamic_rotate %11 by %c495_i32 dim 1 : vector<16x512xf32>, i32 -> vector<16x512xf32>
    %c8 = arith.constant 8 : index
    %c0_44 = arith.constant 0 : index
    %c0_45 = arith.constant 0 : index
    %87 = vector.load %arg4[%c8, %c0_44, %c0_45] : memref<9x16x1xf32, #tpu.memory_space<vmem>>, vector<1x16x1xf32>
    %88 = vector.shape_cast %87 : vector<1x16x1xf32> to vector<16x1xf32>
    %89 = vector.broadcast %88 : vector<16x1xf32> to vector<16x512xf32>
    %90 = arith.mulf %86, %89 : vector<16x512xf32>
    %c8_46 = arith.constant 8 : index
    %c0_47 = arith.constant 0 : index
    %c0_48 = arith.constant 0 : index
    %91 = vector.load %arg5[%c8_46, %c0_47, %c0_48] : memref<9x1x512xf32, #tpu.memory_space<vmem>>, vector<1x1x512xf32>
    %92 = vector.shape_cast %91 : vector<1x1x512xf32> to vector<1x512xf32>
    %93 = vector.broadcast %92 : vector<1x512xf32> to vector<16x512xf32>
    %94 = arith.mulf %90, %93 : vector<16x512xf32>
    %95 = arith.addf %85, %94 : vector<16x512xf32>
    %c0_49 = arith.constant 0 : index
    %c0_50 = arith.constant 0 : index
    %96 = vector.load %arg6[%c0_49, %c0_50] : memref<16x1xf32, #tpu.memory_space<vmem>>, vector<16x1xf32>
    %97 = vector.broadcast %96 : vector<16x1xf32> to vector<16x512xf32>
    %98 = arith.addf %95, %97 : vector<16x512xf32>
    %99 = arith.negf %98 : vector<16x512xf32>
    %100 = math.exp %99 : vector<16x512xf32>
    %cst_51 = arith.constant 1.000000e+00 : f32
    %101 = vector.broadcast %cst_51 : f32 to vector<16x512xf32>
    %102 = arith.addf %101, %100 : vector<16x512xf32>
    %103 = arith.divf %101, %102 : vector<16x512xf32>
    %104 = arith.mulf %98, %103 : vector<16x512xf32>
    %c0_52 = arith.constant 0 : index
    %c0_53 = arith.constant 0 : index
    %105 = vector.load %arg7[%c0_52, %c0_53] : memref<16x2xf32, #tpu.memory_space<vmem>>, vector<16x2xf32>
    %c0_54 = arith.constant 0 : index
    %c0_55 = arith.constant 0 : index
    %106 = vector.load %arg8[%c0_54, %c0_55] : memref<1x2xf32, #tpu.memory_space<vmem>>, vector<1x2xf32>
    %c0_56 = arith.constant 0 : index
    %c0_57 = arith.constant 0 : index
    %107 = vector.load %arg9[%c0_56, %c0_57] : memref<16x2xf32, #tpu.memory_space<vmem>>, vector<16x2xf32>
    %c0_58 = arith.constant 0 : index
    %c0_59 = arith.constant 0 : index
    %108 = vector.load %arg10[%c0_58, %c0_59] : memref<16x1xf32, #tpu.memory_space<vmem>>, vector<16x1xf32>
    %109 = vector.extract_strided_slice %104 {offsets = [0, 0], sizes = [16, 256], strides = [1, 1]} : vector<16x512xf32> to vector<16x256xf32>
    %cst_60 = arith.constant dense<0.000000e+00> : vector<16xf32>
    %110 = vector.multi_reduction <add>, %109, %cst_60 [1] : vector<16x256xf32> to vector<16xf32>
    %111 = vector.shape_cast %110 : vector<16xf32> to vector<16x1xf32>
    %cst_61 = arith.constant 2.560000e+02 : f32
    %112 = vector.broadcast %cst_61 : f32 to vector<16x1xf32>
    %113 = arith.divf %111, %112 : vector<16x1xf32>
    %114 = vector.broadcast %113 : vector<16x1xf32> to vector<16x2xf32>
    %115 = arith.mulf %105, %114 : vector<16x2xf32>
    %cst_62 = arith.constant dense<0.000000e+00> : vector<2xf32>
    %116 = vector.multi_reduction <add>, %115, %cst_62 [0] : vector<16x2xf32> to vector<2xf32>
    %117 = vector.shape_cast %116 : vector<2xf32> to vector<1x2xf32>
    %118 = arith.addf %117, %106 : vector<1x2xf32>
    %119 = arith.negf %118 : vector<1x2xf32>
    %120 = math.exp %119 : vector<1x2xf32>
    %cst_63 = arith.constant 1.000000e+00 : f32
    %121 = vector.broadcast %cst_63 : f32 to vector<1x2xf32>
    %122 = arith.addf %121, %120 : vector<1x2xf32>
    %123 = arith.divf %121, %122 : vector<1x2xf32>
    %124 = arith.mulf %118, %123 : vector<1x2xf32>
    %125 = vector.broadcast %124 : vector<1x2xf32> to vector<16x2xf32>
    %126 = arith.mulf %107, %125 : vector<16x2xf32>
    %cst_64 = arith.constant dense<0.000000e+00> : vector<16xf32>
    %127 = vector.multi_reduction <add>, %126, %cst_64 [1] : vector<16x2xf32> to vector<16xf32>
    %128 = vector.shape_cast %127 : vector<16xf32> to vector<16x1xf32>
    %129 = arith.addf %128, %108 : vector<16x1xf32>
    %130 = arith.negf %129 : vector<16x1xf32>
    %131 = math.exp %130 : vector<16x1xf32>
    %cst_65 = arith.constant 1.000000e+00 : f32
    %132 = vector.broadcast %cst_65 : f32 to vector<16x1xf32>
    %133 = arith.addf %132, %131 : vector<16x1xf32>
    %134 = arith.divf %132, %133 : vector<16x1xf32>
    %135 = vector.broadcast %134 : vector<16x1xf32> to vector<16x256xf32>
    %136 = arith.mulf %109, %135 : vector<16x256xf32>
    %137 = vector.extract_strided_slice %104 {offsets = [0, 256], sizes = [16, 256], strides = [1, 1]} : vector<16x512xf32> to vector<16x256xf32>
    %cst_66 = arith.constant dense<0.000000e+00> : vector<16xf32>
    %138 = vector.multi_reduction <add>, %137, %cst_66 [1] : vector<16x256xf32> to vector<16xf32>
    %139 = vector.shape_cast %138 : vector<16xf32> to vector<16x1xf32>
    %cst_67 = arith.constant 2.560000e+02 : f32
    %140 = vector.broadcast %cst_67 : f32 to vector<16x1xf32>
    %141 = arith.divf %139, %140 : vector<16x1xf32>
    %142 = vector.broadcast %141 : vector<16x1xf32> to vector<16x2xf32>
    %143 = arith.mulf %105, %142 : vector<16x2xf32>
    %cst_68 = arith.constant dense<0.000000e+00> : vector<2xf32>
    %144 = vector.multi_reduction <add>, %143, %cst_68 [0] : vector<16x2xf32> to vector<2xf32>
    %145 = vector.shape_cast %144 : vector<2xf32> to vector<1x2xf32>
    %146 = arith.addf %145, %106 : vector<1x2xf32>
    %147 = arith.negf %146 : vector<1x2xf32>
    %148 = math.exp %147 : vector<1x2xf32>
    %cst_69 = arith.constant 1.000000e+00 : f32
    %149 = vector.broadcast %cst_69 : f32 to vector<1x2xf32>
    %150 = arith.addf %149, %148 : vector<1x2xf32>
    %151 = arith.divf %149, %150 : vector<1x2xf32>
    %152 = arith.mulf %146, %151 : vector<1x2xf32>
    %153 = vector.broadcast %152 : vector<1x2xf32> to vector<16x2xf32>
    %154 = arith.mulf %107, %153 : vector<16x2xf32>
    %cst_70 = arith.constant dense<0.000000e+00> : vector<16xf32>
    %155 = vector.multi_reduction <add>, %154, %cst_70 [1] : vector<16x2xf32> to vector<16xf32>
    %156 = vector.shape_cast %155 : vector<16xf32> to vector<16x1xf32>
    %157 = arith.addf %156, %108 : vector<16x1xf32>
    %158 = arith.negf %157 : vector<16x1xf32>
    %159 = math.exp %158 : vector<16x1xf32>
    %cst_71 = arith.constant 1.000000e+00 : f32
    %160 = vector.broadcast %cst_71 : f32 to vector<16x1xf32>
    %161 = arith.addf %160, %159 : vector<16x1xf32>
    %162 = arith.divf %160, %161 : vector<16x1xf32>
    %163 = vector.broadcast %162 : vector<16x1xf32> to vector<16x256xf32>
    %164 = arith.mulf %137, %163 : vector<16x256xf32>
    %165 = tpu.concatenate %136, %164 in 1 : vector<16x256xf32>, vector<16x256xf32> -> vector<16x512xf32>
    %c0_72 = arith.constant 0 : index
    %c0_73 = arith.constant 0 : index
    %166 = vector.load %arg11[%c0_72, %c0_73] : memref<8x16xf32, #tpu.memory_space<vmem>>, vector<8x16xf32>
    %cst_74 = arith.constant dense<0.000000e+00> : vector<8x512xf32>
    %167 = tpu.matmul %166, %165, %cst_74 {dimension_numbers = #tpu.dot_dimension_numbers<[1], [0], [0], [1], [0, 0, 1, 1], [], []>} : vector<8x16xf32>, vector<16x512xf32>, vector<8x512xf32> -> vector<8x512xf32>
    %c0_75 = arith.constant 0 : index
    %c0_76 = arith.constant 0 : index
    %168 = vector.load %arg12[%c0_75, %c0_76] : memref<8x1xf32, #tpu.memory_space<vmem>>, vector<8x1xf32>
    %169 = vector.broadcast %168 : vector<8x1xf32> to vector<8x512xf32>
    %170 = arith.addf %167, %169 : vector<8x512xf32>
    %171 = arith.addf %170, %0 : vector<8x512xf32>
    %c0_77 = arith.constant 0 : index
    %c0_78 = arith.constant 0 : index
    %172 = vector.load %arg13[%c0_77, %c0_78] : memref<8x512xf32, #tpu.memory_space<vmem>>, vector<8x512xf32>
    tpu.vector_store %arg13[%c0_77, %c0_78], %171 {strides = array<i32>} : memref<8x512xf32, #tpu.memory_space<vmem>>, vector<8x512xf32>,
    return
  }
  func.func @transform_0(%arg0: i32) -> (i32, i32) {
    %c0_i32 = arith.constant 0 : i32
    %c0_i32_0 = arith.constant 0 : i32
    return %c0_i32, %arg0 : i32, i32
  }
  func.func @transform_1(%arg0: i32) -> (i32, i32) {
    %c0_i32 = arith.constant 0 : i32
    %c0_i32_0 = arith.constant 0 : i32
    %c0_i32_1 = arith.constant 0 : i32
    return %c0_i32, %c0_i32_0 : i32, i32
  }
  func.func @transform_2(%arg0: i32) -> (i32, i32) {
    %c0_i32 = arith.constant 0 : i32
    %c0_i32_0 = arith.constant 0 : i32
    %c0_i32_1 = arith.constant 0 : i32
    return %c0_i32, %c0_i32_0 : i32, i32
  }
  func.func @transform_3(%arg0: i32) -> (i32, i32, i32) {
    %c0_i32 = arith.constant 0 : i32
    %c0_i32_0 = arith.constant 0 : i32
    %c0_i32_1 = arith.constant 0 : i32
    %c0_i32_2 = arith.constant 0 : i32
    return %c0_i32, %c0_i32_0, %c0_i32_1 : i32, i32, i32
  }
  func.func @transform_4(%arg0: i32) -> (i32, i32, i32) {
    %c0_i32 = arith.constant 0 : i32
    %c0_i32_0 = arith.constant 0 : i32
    %c0_i32_1 = arith.constant 0 : i32
    %c0_i32_2 = arith.constant 0 : i32
    return %c0_i32, %c0_i32_0, %c0_i32_1 : i32, i32, i32
  }
  func.func @transform_5(%arg0: i32) -> (i32, i32) {
    %c0_i32 = arith.constant 0 : i32
    %c0_i32_0 = arith.constant 0 : i32
    %c0_i32_1 = arith.constant 0 : i32
    return %c0_i32, %c0_i32_0 : i32, i32
  }
  func.func @transform_6(%arg0: i32) -> (i32, i32) {
    %c0_i32 = arith.constant 0 : i32
    %c0_i32_0 = arith.constant 0 : i32
    %c0_i32_1 = arith.constant 0 : i32
    return %c0_i32, %c0_i32_0 : i32, i32
  }
  func.func @transform_7(%arg0: i32) -> (i32, i32) {
    %c0_i32 = arith.constant 0 : i32
    %c0_i32_0 = arith.constant 0 : i32
    %c0_i32_1 = arith.constant 0 : i32
    return %c0_i32, %c0_i32_0 : i32, i32
  }
  func.func @transform_8(%arg0: i32) -> (i32, i32) {
    %c0_i32 = arith.constant 0 : i32
    %c0_i32_0 = arith.constant 0 : i32
    %c0_i32_1 = arith.constant 0 : i32
    return %c0_i32, %c0_i32_0 : i32, i32
  }
  func.func @transform_9(%arg0: i32) -> (i32, i32) {
    %c0_i32 = arith.constant 0 : i32
    %c0_i32_0 = arith.constant 0 : i32
    %c0_i32_1 = arith.constant 0 : i32
    return %c0_i32, %c0_i32_0 : i32, i32
  }
  func.func @transform_10(%arg0: i32) -> (i32, i32) {
    %c0_i32 = arith.constant 0 : i32
    %c0_i32_0 = arith.constant 0 : i32
    %c0_i32_1 = arith.constant 0 : i32
    return %c0_i32, %c0_i32_0 : i32, i32
  }
  func.func @transform_11(%arg0: i32) -> (i32, i32) {
    %c0_i32 = arith.constant 0 : i32
    %c0_i32_0 = arith.constant 0 : i32
    %c0_i32_1 = arith.constant 0 : i32
    return %c0_i32, %c0_i32_0 : i32, i32
  }
  func.func @transform_12(%arg0: i32) -> (i32, i32) {
    %c0_i32 = arith.constant 0 : i32
    %c0_i32_0 = arith.constant 0 : i32
    return %c0_i32, %arg0 : i32, i32
  }
}

</mosaic_0001>

<llo_original>
// kernel: tpu_custom_call.1
$region0: #{tpu_custom_call.1}
  #allocation0 [shape = 'u32[]', space=smem, size = 0x4, offset = 0x4, fixed_abs, tag = 'smem constant byte address 0x4 - core index']
  #allocation1 [shape = 'u32[144,128]{1,0:T(1,128)}', space=vmem, size = 0x12000, scoped, tag = 'internal scratch']
  %s0 = inlined_call_operand.vmem [shape: f32[8,512], index: 0, kind: input, shape index: {}]
  %s1 = inlined_call_operand.vmem [shape: f32[16,8], index: 1, kind: input, shape index: {}]
  %s2 = inlined_call_operand.vmem [shape: f32[16,1], index: 2, kind: input, shape index: {}]
  %s3 = inlined_call_operand.vmem [shape: f32[9,16,1], index: 3, kind: input, shape index: {}]
  %s4 = inlined_call_operand.vmem [shape: f32[9,1,512], index: 4, kind: input, shape index: {}]
  %s5 = inlined_call_operand.vmem [shape: f32[16,1], index: 5, kind: input, shape index: {}]
  %s6 = inlined_call_operand.vmem [shape: f32[16,2], index: 6, kind: input, shape index: {}]
  %s7 = inlined_call_operand.vmem [shape: f32[1,2], index: 7, kind: input, shape index: {}]
  %s8 = inlined_call_operand.vmem [shape: f32[16,2], index: 8, kind: input, shape index: {}]
  %s9 = inlined_call_operand.vmem [shape: f32[16,1], index: 9, kind: input, shape index: {}]
  %s10 = inlined_call_operand.vmem [shape: f32[8,16], index: 10, kind: input, shape index: {}]
  %s11 = inlined_call_operand.vmem [shape: f32[8,1], index: 11, kind: input, shape index: {}]
  %s12 = inlined_call_operand.hbm [shape: f32[8,512], index: 12, kind: output, shape index: {}]
  %s13 = sld [smem:[#allocation0]]
  $region58: #{tpu_custom_call.1} parent=0
    _
  %s15 = ssub.s32 1, %s13
  %s16 = scalar_select 0, %s15, %s13
  $region1: #{tpu_custom_call.1} parent=0
    #allocation2 [shape = 'u8[16384]{0}', space=vmem, size = 0x4000, scoped, tag = 'output window, operand 0, single buffered']
    #allocation3 [shape = 's32[1]{0}', space=sflag, size = 0x4, scoped, tag = 'scoped memory for tpu_custom_call.1']
    %17 = vsyncpa [#allocation3], 0
    // Predicated region
    $region2: #{tpu_custom_call.1} parent=1 // pred_check
      _
    $region3: #{tpu_custom_call.1} parent=1 // pred_check_branch
      %19 = sbr.rel (0) target = $region5
    $region4: #{tpu_custom_call.1} parent=1 // pred_region
      _
    $region5: #{tpu_custom_call.1} parent=1 // pred_fallthru
      _
    // Predicated region
    $region6: #{tpu_custom_call.1} parent=1 // pred_check
      _
    $region7: #{tpu_custom_call.1} parent=1 // pred_check_branch
      %21 = sbr.rel (0) target = $region9
    $region8: #{tpu_custom_call.1} parent=1 // pred_region
      _
    $region9: #{tpu_custom_call.1} parent=1 // pred_fallthru
      _
    // Predicated region
    $region10: #{tpu_custom_call.1} parent=1 // pred_check
      _
    $region11: #{tpu_custom_call.1} parent=1 // pred_check_branch
      %23 = sbr.rel (0) target = $region13
    $region12: #{tpu_custom_call.1} parent=1 // pred_region
      _
    $region13: #{tpu_custom_call.1} parent=1 // pred_fallthru
      _
    // Predicated region
    $region14: #{tpu_custom_call.1} parent=1 // pred_check
      _
    $region15: #{tpu_custom_call.1} parent=1 // pred_check_branch
      %25 = sbr.rel (0) target = $region17
    $region16: #{tpu_custom_call.1} parent=1 // pred_region
      _
    $region17: #{tpu_custom_call.1} parent=1 // pred_fallthru
      _
    // Predicated region
    $region18: #{tpu_custom_call.1} parent=1 // pred_check
      _
    $region19: #{tpu_custom_call.1} parent=1 // pred_check_branch
      %27 = sbr.rel (0) target = $region21
    $region20: #{tpu_custom_call.1} parent=1 // pred_region
      _
    $region21: #{tpu_custom_call.1} parent=1 // pred_fallthru
      _
    // Predicated region
    $region22: #{tpu_custom_call.1} parent=1 // pred_check
      _
    $region23: #{tpu_custom_call.1} parent=1 // pred_check_branch
      %29 = sbr.rel (0) target = $region25
    $region24: #{tpu_custom_call.1} parent=1 // pred_region
      _
    $region25: #{tpu_custom_call.1} parent=1 // pred_fallthru
      _
    // Predicated region
    $region26: #{tpu_custom_call.1} parent=1 // pred_check
      _
    $region27: #{tpu_custom_call.1} parent=1 // pred_check_branch
      %31 = sbr.rel (0) target = $region29
    $region28: #{tpu_custom_call.1} parent=1 // pred_region
      _
    $region29: #{tpu_custom_call.1} parent=1 // pred_fallthru
      _
    // Predicated region
    $region30: #{tpu_custom_call.1} parent=1 // pred_check
      _
    $region31: #{tpu_custom_call.1} parent=1 // pred_check_branch
      %33 = sbr.rel (0) target = $region33
    $region32: #{tpu_custom_call.1} parent=1 // pred_region
      _
    $region33: #{tpu_custom_call.1} parent=1 // pred_fallthru
      _
    // Predicated region
    $region34: #{tpu_custom_call.1} parent=1 // pred_check
      _
    $region35: #{tpu_custom_call.1} parent=1 // pred_check_branch
      %35 = sbr.rel (0) target = $region37
    $region36: #{tpu_custom_call.1} parent=1 // pred_region
      _
    $region37: #{tpu_custom_call.1} parent=1 // pred_fallthru
      _
    // Predicated region
    $region38: #{tpu_custom_call.1} parent=1 // pred_check
      _
    $region39: #{tpu_custom_call.1} parent=1 // pred_check_branch
      %37 = sbr.rel (0) target = $region41
    $region40: #{tpu_custom_call.1} parent=1 // pred_region
      _
    $region41: #{tpu_custom_call.1} parent=1 // pred_fallthru
      _
    // Predicated region
    $region42: #{tpu_custom_call.1} parent=1 // pred_check
      _
    $region43: #{tpu_custom_call.1} parent=1 // pred_check_branch
      %39 = sbr.rel (0) target = $region45
    $region44: #{tpu_custom_call.1} parent=1 // pred_region
      _
    $region45: #{tpu_custom_call.1} parent=1 // pred_fallthru
      _
    // Predicated region
    $region46: #{tpu_custom_call.1} parent=1 // pred_check
      _
    $region47: #{tpu_custom_call.1} parent=1 // pred_check_branch
      %41 = sbr.rel (0) target = $region49
    $region48: #{tpu_custom_call.1} parent=1 // pred_region
      _
    $region49: #{tpu_custom_call.1} parent=1 // pred_fallthru
      _
    %v42 = vld [vmem:[%s0] sm:$0xff]
    %v43 = vld [vmem:[%s0 + $0x8] sm:$0xff]
    %v44 = vld [vmem:[%s0 + $0x10] sm:$0xff]
    %v45 = vld [vmem:[%s0 + $0x18] sm:$0xff]
    %v46 = vld [vmem:[%s1] sm:$0xff]
    %v47 = vld [vmem:[%s1 + $0x8] sm:$0xff]
    %v48 = vld [vmem:[%s2] sm:$0xff]
    %v49 = vld [vmem:[%s2 + $0x8] sm:$0xff]
    %51 = vset.pattern.permute.xlu0 0
    %52 = vperm.xlu0 %51, %v48
    %v53 = vpop.permute.xlu0 %52
    %56 = vset.pattern.permute.xlu0 0
    %57 = vperm.xlu0 %56, %v49
    %v58 = vpop.permute.xlu0 %57
    %vm60 = vcmask 64512
    %v62 = vsel %vm60, %v46, 0
    %v65 = vsel %vm60, %v47, 0
    %67 = vmatprep.subr.mxu0 %v43
    %68 = vmatpush1.msra.mxu0 %v42
    %69 = vmatprep.subr.mxu0 0.0
    %70 = vmatpush1.msra.mxu0 0.0
    %71 = vmatprep.subr.mxu0 0.0
    %72 = vmatpush1.msra.mxu0 0.0
    %73 = vmatprep.subr.mxu0 0.0
    %74 = vmatpush1.msra.mxu0 0.0
    %75 = vmatprep.subr.mxu0 0.0
    %76 = vmatpush1.msra.mxu0 0.0
    %77 = vmatprep.subr.mxu0 0.0
    %78 = vmatpush1.msra.mxu0 0.0
    %79 = vmatprep.subr.mxu0 0.0
    %80 = vmatpush1.msra.mxu0 0.0
    %81 = vmatprep.subr.mxu0 0.0
    %82 = vmatpush1.msra.mxu0 0.0
    %83 = vmatprep.subr.mxu0 0.0
    %84 = vmatpush1.msra.mxu0 0.0
    %85 = vmatprep.subr.mxu0 0.0
    %86 = vmatpush1.msra.mxu0 0.0
    %87 = vmatprep.subr.mxu0 0.0
    %88 = vmatpush1.msra.mxu0 0.0
    %89 = vmatprep.subr.mxu0 0.0
    %90 = vmatpush1.msra.mxu0 0.0
    %91 = vmatprep.subr.mxu0 0.0
    %92 = vmatpush1.msra.mxu0 0.0
    %93 = vmatprep.subr.mxu0 0.0
    %94 = vmatpush1.msra.mxu0 0.0
    %95 = vmatprep.subr.mxu0 0.0
    %96 = vmatpush1.msra.mxu0 0.0
    %97 = vmatprep.subr.mxu0 0.0
    %98 = vmatpush1.msra.mxu0 0.0
    %99 = vmatprep.subr.mxu0 0.0
    %100 = vmatpush1.msra.mxu0 0.0
    %101 = vmatprep.subr.mxu0 0.0
    %102 = vmatpush1.msra.mxu0 0.0
    %103 = vmatprep.subr.mxu0 0.0
    %104 = vmatpush1.msra.mxu0 0.0
    %105 = vmatprep.subr.mxu0 0.0
    %106 = vmatpush1.msra.mxu0 0.0
    %107 = vmatprep.subr.mxu0 0.0
    %108 = vmatpush1.msra.mxu0 0.0
    %109 = vmatprep.subr.mxu0 0.0
    %110 = vmatpush1.msra.mxu0 0.0
    %111 = vmatprep.subr.mxu0 0.0
    %112 = vmatpush1.msra.mxu0 0.0
    %113 = vmatprep.subr.mxu0 0.0
    %114 = vmatpush1.msra.mxu0 0.0
    %115 = vmatprep.subr.mxu0 0.0
    %116 = vmatpush1.msra.mxu0 0.0
    %117 = vmatprep.subr.mxu0 0.0
    %118 = vmatpush1.msra.mxu0 0.0
    %119 = vmatprep.subr.mxu0 0.0
    %120 = vmatpush1.msra.mxu0 0.0
    %121 = vmatprep.subr.mxu0 0.0
    %122 = vmatpush1.msra.mxu0 0.0
    %123 = vmatprep.subr.mxu0 0.0
    %124 = vmatpush1.msra.mxu0 0.0
    %125 = vmatprep.subr.mxu0 0.0
    %126 = vmatpush1.msra.mxu0 0.0
    %127 = vmatprep.subr.mxu0 0.0
    %128 = vmatpush1.msra.mxu0 0.0
    %129 = vmatprep.subr.mxu0 0.0
    %130 = vmatpush1.msra.mxu0 0.0
    %131 = vmatprep.mubr.f32.mxu0 0.0
    %132 = vmatmul.mubr.f32.gmra.mrb[0].mxu0 %v62
    %v133 = vpop.f32.mrb[0].mxu0
    %v134 = vadd.f32 %v53, %v133
    %v135 = vpop.f32.mrb[0].mxu0
    %v136 = vadd.f32 %v53, %v135
    %137 = vmatprep.mubr.f32.mxu0 0.0
    %138 = vmatmul.mubr.f32.gmra.mrb[0].mxu0 %v65
    %v139 = vpop.f32.mrb[0].mxu0
    %v140 = vadd.f32 %v58, %v139
    %v141 = vpop.f32.mrb[0].mxu0
    %v142 = vadd.f32 %v58, %v141
    %143 = vdwg.mxu0
    %144 = vmatprep.subr.mxu0 %v45
    %145 = vmatpush1.msra.mxu0 %v44
    %146 = vmatprep.subr.mxu0 0.0
    %147 = vmatpush1.msra.mxu0 0.0
    %148 = vmatprep.subr.mxu0 0.0
    %149 = vmatpush1.msra.mxu0 0.0
    %150 = vmatprep.subr.mxu0 0.0
    %151 = vmatpush1.msra.mxu0 0.0
    %152 = vmatprep.subr.mxu0 0.0
    %153 = vmatpush1.msra.mxu0 0.0
    %154 = vmatprep.subr.mxu0 0.0
    %155 = vmatpush1.msra.mxu0 0.0
    %156 = vmatprep.subr.mxu0 0.0
    %157 = vmatpush1.msra.mxu0 0.0
    %158 = vmatprep.subr.mxu0 0.0
    %159 = vmatpush1.msra.mxu0 0.0
    %160 = vmatprep.subr.mxu0 0.0
    %161 = vmatpush1.msra.mxu0 0.0
    %162 = vmatprep.subr.mxu0 0.0
    %163 = vmatpush1.msra.mxu0 0.0
    %164 = vmatprep.subr.mxu0 0.0
    %165 = vmatpush1.msra.mxu0 0.0
    %166 = vmatprep.subr.mxu0 0.0
    %167 = vmatpush1.msra.mxu0 0.0
    %168 = vmatprep.subr.mxu0 0.0
    %169 = vmatpush1.msra.mxu0 0.0
    %170 = vmatprep.subr.mxu0 0.0
    %171 = vmatpush1.msra.mxu0 0.0
    %172 = vmatprep.subr.mxu0 0.0
    %173 = vmatpush1.msra.mxu0 0.0
    %174 = vmatprep.subr.mxu0 0.0
    %175 = vmatpush1.msra.mxu0 0.0
    %176 = vmatprep.subr.mxu0 0.0
    %177 = vmatpush1.msra.mxu0 0.0
    %178 = vmatprep.subr.mxu0 0.0
    %179 = vmatpush1.msra.mxu0 0.0
    %180 = vmatprep.subr.mxu0 0.0
    %181 = vmatpush1.msra.mxu0 0.0
    %182 = vmatprep.subr.mxu0 0.0
    %183 = vmatpush1.msra.mxu0 0.0
    %184 = vmatprep.subr.mxu0 0.0
    %185 = vmatpush1.msra.mxu0 0.0
    %186 = vmatprep.subr.mxu0 0.0
    %187 = vmatpush1.msra.mxu0 0.0
    %188 = vmatprep.subr.mxu0 0.0
    %189 = vmatpush1.msra.mxu0 0.0
    %190 = vmatprep.subr.mxu0 0.0
    %191 = vmatpush1.msra.mxu0 0.0
    %192 = vmatprep.subr.mxu0 0.0
    %193 = vmatpush1.msra.mxu0 0.0
    %194 = vmatprep.subr.mxu0 0.0
    %195 = vmatpush1.msra.mxu0 0.0
    %196 = vmatprep.subr.mxu0 0.0
    %197 = vmatpush1.msra.mxu0 0.0
    %198 = vmatprep.subr.mxu0 0.0
    %199 = vmatpush1.msra.mxu0 0.0
    %200 = vmatprep.subr.mxu0 0.0
    %201 = vmatpush1.msra.mxu0 0.0
    %202 = vmatprep.subr.mxu0 0.0
    %203 = vmatpush1.msra.mxu0 0.0
    %204 = vmatprep.subr.mxu0 0.0
    %205 = vmatpush1.msra.mxu0 0.0
    %206 = vmatprep.subr.mxu0 0.0
    %207 = vmatpush1.msra.mxu0 0.0
    %208 = vmatprep.mubr.f32.mxu0 0.0
    %209 = vmatmul.mubr.f32.gmra.mrb[0].mxu0 %v62
    %v210 = vpop.f32.mrb[0].mxu0
    %v211 = vadd.f32 %v53, %v210
    %v212 = vpop.f32.mrb[0].mxu0
    %v213 = vadd.f32 %v53, %v212
    %214 = vmatprep.mubr.f32.mxu0 0.0
    %215 = vmatmul.mubr.f32.gmra.mrb[0].mxu0 %v65
    %v216 = vpop.f32.mrb[0].mxu0
    %v217 = vadd.f32 %v58, %v216
    %v218 = vpop.f32.mrb[0].mxu0
    %v219 = vadd.f32 %v58, %v218
    %220 = vdwg.mxu0
    %v221 = vxor.u32 %v134, 2147483648
    %v222 = vxor.u32 %v136, 2147483648
    %v223 = vxor.u32 %v211, 2147483648
    %v224 = vxor.u32 %v213, 2147483648
    %v225 = vxor.u32 %v140, 2147483648
    %v226 = vxor.u32 %v142, 2147483648
    %v227 = vxor.u32 %v217, 2147483648
    %v228 = vxor.u32 %v219, 2147483648
    %v229 = vmul.f32 %v221, 1.442695
    %v230 = vpow.pop %v229
    %v231 = vmul.f32 %v222, 1.442695
    %v232 = vpow.pop %v231
    %v233 = vmul.f32 %v223, 1.442695
    %v234 = vpow.pop %v233
    %v235 = vmul.f32 %v224, 1.442695
    %v236 = vpow.pop %v235
    %v237 = vmul.f32 %v225, 1.442695
    %v238 = vpow.pop %v237
    %v239 = vmul.f32 %v226, 1.442695
    %v240 = vpow.pop %v239
    %v241 = vmul.f32 %v227, 1.442695
    %v242 = vpow.pop %v241
    %v243 = vmul.f32 %v228, 1.442695
    %v244 = vpow.pop %v243
    %v245 = vadd.f32 %v230, 1.0
    %v246 = vadd.f32 %v232, 1.0
    %v247 = vadd.f32 %v234, 1.0
    %v248 = vadd.f32 %v236, 1.0
    %v249 = vadd.f32 %v238, 1.0
    %v250 = vadd.f32 %v240, 1.0
    %v251 = vadd.f32 %v242, 1.0
    %v252 = vadd.f32 %v244, 1.0
    %v253 = vrcp.pop %v245
    %v254 = vmul.f32 1.0, %v253
    %v255 = vrcp.pop %v246
    %v256 = vmul.f32 1.0, %v255
    %v257 = vrcp.pop %v247
    %v258 = vmul.f32 1.0, %v257
    %v259 = vrcp.pop %v248
    %v260 = vmul.f32 1.0, %v259
    %v261 = vrcp.pop %v249
    %v262 = vmul.f32 1.0, %v261
    %v263 = vrcp.pop %v250
    %v264 = vmul.f32 1.0, %v263
    %v265 = vrcp.pop %v251
    %v266 = vmul.f32 1.0, %v265
    %v267 = vrcp.pop %v252
    %v268 = vmul.f32 1.0, %v267
    %v269 = vmul.f32 %v134, %v254
    %v270 = vmul.f32 %v136, %v256
    %v271 = vmul.f32 %v211, %v258
    %v272 = vmul.f32 %v213, %v260
    %v273 = vmul.f32 %v140, %v262
    %v274 = vmul.f32 %v142, %v264
    %v275 = vmul.f32 %v217, %v266
    %v276 = vmul.f32 %v219, %v268
    %s277 = scalar_lea.vmem %s3, 64
    %v278 = vld [vmem:[%s277] sm:$0xff]
    %v279 = vld [vmem:[%s277 + $0x8] sm:$0xff]
    %281 = vset.pattern.permute.xlu0 0
    %282 = vperm.xlu0 %281, %v278
    %v283 = vpop.permute.xlu0 %282
    %286 = vset.pattern.permute.xlu0 0
    %287 = vperm.xlu0 %286, %v279
    %v288 = vpop.permute.xlu0 %287
    %v290 = vmul.f32 %v269, %v283
    %v291 = vmul.f32 %v270, %v283
    %v292 = vmul.f32 %v271, %v283
    %v293 = vmul.f32 %v272, %v283
    %v294 = vmul.f32 %v273, %v288
    %v295 = vmul.f32 %v274, %v288
    %v296 = vmul.f32 %v275, %v288
    %v297 = vmul.f32 %v276, %v288
    %298 = vrot.lane.b32.xlu0 %v269, 17
    %v299 = vpop.permute.xlu0 %298
    %300 = vrot.lane.b32.xlu0 %v273, 17
    %v301 = vpop.permute.xlu0 %300
    %302 = vrot.lane.b32.xlu0 %v270, 17
    %v303 = vpop.permute.xlu0 %302
    %304 = vrot.lane.b32.xlu0 %v274, 17
    %v305 = vpop.permute.xlu0 %304
    %306 = vrot.lane.b32.xlu0 %v271, 17
    %v307 = vpop.permute.xlu0 %306
    %308 = vrot.lane.b32.xlu0 %v275, 17
    %v309 = vpop.permute.xlu0 %308
    %310 = vrot.lane.b32.xlu0 %v272, 17
    %v311 = vpop.permute.xlu0 %310
    %312 = vrot.lane.b32.xlu0 %v276, 17
    %v313 = vpop.permute.xlu0 %312
    %v314 = vlaneseq
    %v315 = vand.u32 %v314, 127
    %vm316 = vcmp.lt.s32.totalorder %v315, 17
    %v317 = vsel %vm316, %v307, %v311
    %v318 = vsel %vm316, %v309, %v313
    %v319 = vsel %vm316, %v303, %v307
    %v320 = vsel %vm316, %v305, %v309
    %v321 = vsel %vm316, %v299, %v303
    %v322 = vsel %vm316, %v301, %v305
    %v323 = vsel %vm316, %v311, %v299
    %v324 = vsel %vm316, %v313, %v301
    %v325 = vld [vmem:[%s3] sm:$0xff]
    %v326 = vld [vmem:[%s3 + $0x8] sm:$0xff]
    %328 = vset.pattern.permute.xlu0 0
    %329 = vperm.xlu0 %328, %v325
    %v330 = vpop.permute.xlu0 %329
    %333 = vset.pattern.permute.xlu0 0
    %334 = vperm.xlu0 %333, %v326
    %v335 = vpop.permute.xlu0 %334
    %v337 = vmul.f32 %v323, %v330
    %v338 = vmul.f32 %v321, %v330
    %v339 = vmul.f32 %v319, %v330
    %v340 = vmul.f32 %v317, %v330
    %v341 = vmul.f32 %v324, %v335
    %v342 = vmul.f32 %v322, %v335
    %v343 = vmul.f32 %v320, %v335
    %v344 = vmul.f32 %v318, %v335
    %v345 = vld [vmem:[%s4] sm:$0xf]
    %v347 = vlaneseq
    %v348 = vshrl.u32 %v347, 7
    %v349 = vsub.s32 0, %v348
    %v350 = vrot.slane %v345, %v349
    %v351 = vlaneseq
    %v352 = vshrl.u32 %v351, 7
    %v353 = vsub.s32 1, %v352
    %v354 = vrot.slane %v345, %v353
    %v355 = vlaneseq
    %v356 = vshrl.u32 %v355, 7
    %v357 = vsub.s32 2, %v356
    %v358 = vrot.slane %v345, %v357
    %v359 = vlaneseq
    %v360 = vshrl.u32 %v359, 7
    %v361 = vsub.s32 3, %v360
    %v362 = vrot.slane %v345, %v361
    %v367 = vmul.f32 %v337, %v350
    %v368 = vmul.f32 %v338, %v354
    %v369 = vmul.f32 %v339, %v358
    %v370 = vmul.f32 %v340, %v362
    %v371 = vmul.f32 %v341, %v350
    %v372 = vmul.f32 %v342, %v354
    %v373 = vmul.f32 %v343, %v358
    %v374 = vmul.f32 %v344, %v362
    %v375 = vadd.f32 %v290, %v367
    %v376 = vadd.f32 %v291, %v368
    %v377 = vadd.f32 %v292, %v369
    %v378 = vadd.f32 %v293, %v370
    %v379 = vadd.f32 %v294, %v371
    %v380 = vadd.f32 %v295, %v372
    %v381 = vadd.f32 %v296, %v373
    %v382 = vadd.f32 %v297, %v374
    %383 = vrot.lane.b32.xlu0 %v269, 16
    %v384 = vpop.permute.xlu0 %383
    %385 = vrot.lane.b32.xlu0 %v273, 16
    %v386 = vpop.permute.xlu0 %385
    %387 = vrot.lane.b32.xlu0 %v270, 16
    %v388 = vpop.permute.xlu0 %387
    %389 = vrot.lane.b32.xlu0 %v274, 16
    %v390 = vpop.permute.xlu0 %389
    %391 = vrot.lane.b32.xlu0 %v271, 16
    %v392 = vpop.permute.xlu0 %391
    %393 = vrot.lane.b32.xlu0 %v275, 16
    %v394 = vpop.permute.xlu0 %393
    %395 = vrot.lane.b32.xlu0 %v272, 16
    %v396 = vpop.permute.xlu0 %395
    %397 = vrot.lane.b32.xlu0 %v276, 16
    %v398 = vpop.permute.xlu0 %397
    %vm399 = vcmp.lt.s32.totalorder %v315, 16
    %v400 = vsel %vm399, %v392, %v396
    %v401 = vsel %vm399, %v394, %v398
    %v402 = vsel %vm399, %v388, %v392
    %v403 = vsel %vm399, %v390, %v394
    %v404 = vsel %vm399, %v384, %v388
    %v405 = vsel %vm399, %v386, %v390
    %v406 = vsel %vm399, %v396, %v384
    %v407 = vsel %vm399, %v398, %v386
    %s408 = scalar_lea.vmem %s3, 16
    %v409 = vld [vmem:[%s408] sm:$0xff]
    %v410 = vld [vmem:[%s408 + $0x8] sm:$0xff]
    %412 = vset.pattern.permute.xlu0 0
    %413 = vperm.xlu0 %412, %v409
    %v414 = vpop.permute.xlu0 %413
    %417 = vset.pattern.permute.xlu0 0
    %418 = vperm.xlu0 %417, %v410
    %v419 = vpop.permute.xlu0 %418
    %v421 = vmul.f32 %v406, %v414
    %v422 = vmul.f32 %v404, %v414
    %v423 = vmul.f32 %v402, %v414
    %v424 = vmul.f32 %v400, %v414
    %v425 = vmul.f32 %v407, %v419
    %v426 = vmul.f32 %v405, %v419
    %v427 = vmul.f32 %v403, %v419
    %v428 = vmul.f32 %v401, %v419
    %s429 = scalar_lea.vmem %s4, 4
    %v430 = vld [vmem:[%s429] sm:$0xf]
    %v432 = vlaneseq
    %v433 = vshrl.u32 %v432, 7
    %v434 = vsub.s32 0, %v433
    %v435 = vrot.slane %v430, %v434
    %v436 = vlaneseq
    %v437 = vshrl.u32 %v436, 7
    %v438 = vsub.s32 1, %v437
    %v439 = vrot.slane %v430, %v438
    %v440 = vlaneseq
    %v441 = vshrl.u32 %v440, 7
    %v442 = vsub.s32 2, %v441
    %v443 = vrot.slane %v430, %v442
    %v444 = vlaneseq
    %v445 = vshrl.u32 %v444, 7
    %v446 = vsub.s32 3, %v445
    %v447 = vrot.slane %v430, %v446
    %v452 = vmul.f32 %v421, %v435
    %v453 = vmul.f32 %v422, %v439
    %v454 = vmul.f32 %v423, %v443
    %v455 = vmul.f32 %v424, %v447
    %v456 = vmul.f32 %v425, %v435
    %v457 = vmul.f32 %v426, %v439
    %v458 = vmul.f32 %v427, %v443
    %v459 = vmul.f32 %v428, %v447
    %v460 = vadd.f32 %v375, %v452
    %v461 = vadd.f32 %v376, %v453
    %v462 = vadd.f32 %v377, %v454
    %v463 = vadd.f32 %v378, %v455
    %v464 = vadd.f32 %v379, %v456
    %v465 = vadd.f32 %v380, %v457
    %v466 = vadd.f32 %v381, %v458
    %v467 = vadd.f32 %v382, %v459
    %468 = vrot.lane.b32.xlu0 %v269, 15
    %v469 = vpop.permute.xlu0 %468
    %470 = vrot.lane.b32.xlu0 %v273, 15
    %v471 = vpop.permute.xlu0 %470
    %472 = vrot.lane.b32.xlu0 %v270, 15
    %v473 = vpop.permute.xlu0 %472
    %474 = vrot.lane.b32.xlu0 %v274, 15
    %v475 = vpop.permute.xlu0 %474
    %476 = vrot.lane.b32.xlu0 %v271, 15
    %v477 = vpop.permute.xlu0 %476
    %478 = vrot.lane.b32.xlu0 %v275, 15
    %v479 = vpop.permute.xlu0 %478
    %480 = vrot.lane.b32.xlu0 %v272, 15
    %v481 = vpop.permute.xlu0 %480
    %482 = vrot.lane.b32.xlu0 %v276, 15
    %v483 = vpop.permute.xlu0 %482
    %vm484 = vcmp.lt.s32.totalorder %v315, 15
    %v485 = vsel %vm484, %v477, %v481
    %v486 = vsel %vm484, %v479, %v483
    %v487 = vsel %vm484, %v473, %v477
    %v488 = vsel %vm484, %v475, %v479
    %v489 = vsel %vm484, %v469, %v473
    %v490 = vsel %vm484, %v471, %v475
    %v491 = vsel %vm484, %v481, %v469
    %v492 = vsel %vm484, %v483, %v471
    %s493 = scalar_lea.vmem %s3, 32
    %v494 = vld [vmem:[%s493] sm:$0xff]
    %v495 = vld [vmem:[%s493 + $0x8] sm:$0xff]
    %497 = vset.pattern.permute.xlu0 0
    %498 = vperm.xlu0 %497, %v494
    %v499 = vpop.permute.xlu0 %498
    %502 = vset.pattern.permute.xlu0 0
    %503 = vperm.xlu0 %502, %v495
    %v504 = vpop.permute.xlu0 %503
    %v506 = vmul.f32 %v491, %v499
    %v507 = vmul.f32 %v489, %v499
    %v508 = vmul.f32 %v487, %v499
    %v509 = vmul.f32 %v485, %v499
    %v510 = vmul.f32 %v492, %v504
    %v511 = vmul.f32 %v490, %v504
    %v512 = vmul.f32 %v488, %v504
    %v513 = vmul.f32 %v486, %v504
    %s514 = scalar_lea.vmem %s4, 8
    %v515 = vld [vmem:[%s514] sm:$0xf]
    %v517 = vlaneseq
    %v518 = vshrl.u32 %v517, 7
    %v519 = vsub.s32 0, %v518
    %v520 = vrot.slane %v515, %v519
    %v521 = vlaneseq
    %v522 = vshrl.u32 %v521, 7
    %v523 = vsub.s32 1, %v522
    %v524 = vrot.slane %v515, %v523
    %v525 = vlaneseq
    %v526 = vshrl.u32 %v525, 7
    %v527 = vsub.s32 2, %v526
    %v528 = vrot.slane %v515, %v527
    %v529 = vlaneseq
    %v530 = vshrl.u32 %v529, 7
    %v531 = vsub.s32 3, %v530
    %v532 = vrot.slane %v515, %v531
    %v537 = vmul.f32 %v506, %v520
    %v538 = vmul.f32 %v507, %v524
    %v539 = vmul.f32 %v508, %v528
    %v540 = vmul.f32 %v509, %v532
    %v541 = vmul.f32 %v510, %v520
    %v542 = vmul.f32 %v511, %v524
    %v543 = vmul.f32 %v512, %v528
    %v544 = vmul.f32 %v513, %v532
    %v545 = vadd.f32 %v460, %v537
    %v546 = vadd.f32 %v461, %v538
    %v547 = vadd.f32 %v462, %v539
    %v548 = vadd.f32 %v463, %v540
    %v549 = vadd.f32 %v464, %v541
    %v550 = vadd.f32 %v465, %v542
    %v551 = vadd.f32 %v466, %v543
    %v552 = vadd.f32 %v467, %v544
    %553 = vrot.lane.b32.xlu0 %v269, 1
    %v554 = vpop.permute.xlu0 %553
    %555 = vrot.lane.b32.xlu0 %v273, 1
    %v556 = vpop.permute.xlu0 %555
    %557 = vrot.lane.b32.xlu0 %v270, 1
    %v558 = vpop.permute.xlu0 %557
    %559 = vrot.lane.b32.xlu0 %v274, 1
    %v560 = vpop.permute.xlu0 %559
    %561 = vrot.lane.b32.xlu0 %v271, 1
    %v562 = vpop.permute.xlu0 %561
    %563 = vrot.lane.b32.xlu0 %v275, 1
    %v564 = vpop.permute.xlu0 %563
    %565 = vrot.lane.b32.xlu0 %v272, 1
    %v566 = vpop.permute.xlu0 %565
    %567 = vrot.lane.b32.xlu0 %v276, 1
    %v568 = vpop.permute.xlu0 %567
    %vm569 = vcmp.lt.s32.totalorder %v315, 1
    %v570 = vsel %vm569, %v562, %v566
    %v571 = vsel %vm569, %v564, %v568
    %v572 = vsel %vm569, %v558, %v562
    %v573 = vsel %vm569, %v560, %v564
    %v574 = vsel %vm569, %v554, %v558
    %v575 = vsel %vm569, %v556, %v560
    %v576 = vsel %vm569, %v566, %v554
    %v577 = vsel %vm569, %v568, %v556
    %s578 = scalar_lea.vmem %s3, 48
    %v579 = vld [vmem:[%s578] sm:$0xff]
    %v580 = vld [vmem:[%s578 + $0x8] sm:$0xff]
    %582 = vset.pattern.permute.xlu0 0
    %583 = vperm.xlu0 %582, %v579
    %v584 = vpop.permute.xlu0 %583
    %587 = vset.pattern.permute.xlu0 0
    %588 = vperm.xlu0 %587, %v580
    %v589 = vpop.permute.xlu0 %588
    %v591 = vmul.f32 %v576, %v584
    %v592 = vmul.f32 %v574, %v584
    %v593 = vmul.f32 %v572, %v584
    %v594 = vmul.f32 %v570, %v584
    %v595 = vmul.f32 %v577, %v589
    %v596 = vmul.f32 %v575, %v589
    %v597 = vmul.f32 %v573, %v589
    %v598 = vmul.f32 %v571, %v589
    %s599 = scalar_lea.vmem %s4, 12
    %v600 = vld [vmem:[%s599] sm:$0xf]
    %v602 = vlaneseq
    %v603 = vshrl.u32 %v602, 7
    %v604 = vsub.s32 0, %v603
    %v605 = vrot.slane %v600, %v604
    %v606 = vlaneseq
    %v607 = vshrl.u32 %v606, 7
    %v608 = vsub.s32 1, %v607
    %v609 = vrot.slane %v600, %v608
    %v610 = vlaneseq
    %v611 = vshrl.u32 %v610, 7
    %v612 = vsub.s32 2, %v611
    %v613 = vrot.slane %v600, %v612
    %v614 = vlaneseq
    %v615 = vshrl.u32 %v614, 7
    %v616 = vsub.s32 3, %v615
    %v617 = vrot.slane %v600, %v616
    %v622 = vmul.f32 %v591, %v605
    %v623 = vmul.f32 %v592, %v609
    %v624 = vmul.f32 %v593, %v613
    %v625 = vmul.f32 %v594, %v617
    %v626 = vmul.f32 %v595, %v605
    %v627 = vmul.f32 %v596, %v609
    %v628 = vmul.f32 %v597, %v613
    %v629 = vmul.f32 %v598, %v617
    %v630 = vadd.f32 %v545, %v622
    %v631 = vadd.f32 %v546, %v623
    %v632 = vadd.f32 %v547, %v624
    %v633 = vadd.f32 %v548, %v625
    %v634 = vadd.f32 %v549, %v626
    %v635 = vadd.f32 %v550, %v627
    %v636 = vadd.f32 %v551, %v628
    %v637 = vadd.f32 %v552, %v629
    %638 = vrot.lane.b32.xlu0 %v269, 127
    %v639 = vpop.permute.xlu0 %638
    %640 = vrot.lane.b32.xlu0 %v273, 127
    %v641 = vpop.permute.xlu0 %640
    %642 = vrot.lane.b32.xlu0 %v270, 127
    %v643 = vpop.permute.xlu0 %642
    %644 = vrot.lane.b32.xlu0 %v274, 127
    %v645 = vpop.permute.xlu0 %644
    %646 = vrot.lane.b32.xlu0 %v271, 127
    %v647 = vpop.permute.xlu0 %646
    %648 = vrot.lane.b32.xlu0 %v275, 127
    %v649 = vpop.permute.xlu0 %648
    %650 = vrot.lane.b32.xlu0 %v272, 127
    %v651 = vpop.permute.xlu0 %650
    %652 = vrot.lane.b32.xlu0 %v276, 127
    %v653 = vpop.permute.xlu0 %652
    %vm654 = vcmp.lt.s32.totalorder %v315, 127
    %v655 = vsel %vm654, %v647, %v651
    %v656 = vsel %vm654, %v649, %v653
    %v657 = vsel %vm654, %v643, %v647
    %v658 = vsel %vm654, %v645, %v649
    %v659 = vsel %vm654, %v639, %v643
    %v660 = vsel %vm654, %v641, %v645
    %v661 = vsel %vm654, %v651, %v639
    %v662 = vsel %vm654, %v653, %v641
    %s663 = scalar_lea.vmem %s3, 80
    %v664 = vld [vmem:[%s663] sm:$0xff]
    %v665 = vld [vmem:[%s663 + $0x8] sm:$0xff]
    %667 = vset.pattern.permute.xlu0 0
    %668 = vperm.xlu0 %667, %v664
    %v669 = vpop.permute.xlu0 %668
    %672 = vset.pattern.permute.xlu0 0
    %673 = vperm.xlu0 %672, %v665
    %v674 = vpop.permute.xlu0 %673
    %v676 = vmul.f32 %v659, %v669
    %v677 = vmul.f32 %v657, %v669
    %v678 = vmul.f32 %v655, %v669
    %v679 = vmul.f32 %v661, %v669
    %v680 = vmul.f32 %v660, %v674
    %v681 = vmul.f32 %v658, %v674
    %v682 = vmul.f32 %v656, %v674
    %v683 = vmul.f32 %v662, %v674
    %s684 = scalar_lea.vmem %s4, 20
    %v685 = vld [vmem:[%s684] sm:$0xf]
    %v687 = vlaneseq
    %v688 = vshrl.u32 %v687, 7
    %v689 = vsub.s32 0, %v688
    %v690 = vrot.slane %v685, %v689
    %v691 = vlaneseq
    %v692 = vshrl.u32 %v691, 7
    %v693 = vsub.s32 1, %v692
    %v694 = vrot.slane %v685, %v693
    %v695 = vlaneseq
    %v696 = vshrl.u32 %v695, 7
    %v697 = vsub.s32 2, %v696
    %v698 = vrot.slane %v685, %v697
    %v699 = vlaneseq
    %v700 = vshrl.u32 %v699, 7
    %v701 = vsub.s32 3, %v700
    %v702 = vrot.slane %v685, %v701
    %v707 = vmul.f32 %v676, %v690
    %v708 = vmul.f32 %v677, %v694
    %v709 = vmul.f32 %v678, %v698
    %v710 = vmul.f32 %v679, %v702
    %v711 = vmul.f32 %v680, %v690
    %v712 = vmul.f32 %v681, %v694
    %v713 = vmul.f32 %v682, %v698
    %v714 = vmul.f32 %v683, %v702
    %v715 = vadd.f32 %v630, %v707
    %v716 = vadd.f32 %v631, %v708
    %v717 = vadd.f32 %v632, %v709
    %v718 = vadd.f32 %v633, %v710
    %v719 = vadd.f32 %v634, %v711
    %v720 = vadd.f32 %v635, %v712
    %v721 = vadd.f32 %v636, %v713
    %v722 = vadd.f32 %v637, %v714
    %723 = vrot.lane.b32.xlu0 %v269, 113
    %v724 = vpop.permute.xlu0 %723
    %725 = vrot.lane.b32.xlu0 %v273, 113
    %v726 = vpop.permute.xlu0 %725
    %727 = vrot.lane.b32.xlu0 %v270, 113
    %v728 = vpop.permute.xlu0 %727
    %729 = vrot.lane.b32.xlu0 %v274, 113
    %v730 = vpop.permute.xlu0 %729
    %731 = vrot.lane.b32.xlu0 %v271, 113
    %v732 = vpop.permute.xlu0 %731
    %733 = vrot.lane.b32.xlu0 %v275, 113
    %v734 = vpop.permute.xlu0 %733
    %735 = vrot.lane.b32.xlu0 %v272, 113
    %v736 = vpop.permute.xlu0 %735
    %737 = vrot.lane.b32.xlu0 %v276, 113
    %v738 = vpop.permute.xlu0 %737
    %vm739 = vcmp.lt.s32.totalorder %v315, 113
    %v740 = vsel %vm739, %v732, %v736
    %v741 = vsel %vm739, %v734, %v738
    %v742 = vsel %vm739, %v728, %v732
    %v743 = vsel %vm739, %v730, %v734
    %v744 = vsel %vm739, %v724, %v728
    %v745 = vsel %vm739, %v726, %v730
    %v746 = vsel %vm739, %v736, %v724
    %v747 = vsel %vm739, %v738, %v726
    %s748 = scalar_lea.vmem %s3, 96
    %v749 = vld [vmem:[%s748] sm:$0xff]
    %v750 = vld [vmem:[%s748 + $0x8] sm:$0xff]
    %752 = vset.pattern.permute.xlu0 0
    %753 = vperm.xlu0 %752, %v749
    %v754 = vpop.permute.xlu0 %753
    %757 = vset.pattern.permute.xlu0 0
    %758 = vperm.xlu0 %757, %v750
    %v759 = vpop.permute.xlu0 %758
    %v761 = vmul.f32 %v744, %v754
    %v762 = vmul.f32 %v742, %v754
    %v763 = vmul.f32 %v740, %v754
    %v764 = vmul.f32 %v746, %v754
    %v765 = vmul.f32 %v745, %v759
    %v766 = vmul.f32 %v743, %v759
    %v767 = vmul.f32 %v741, %v759
    %v768 = vmul.f32 %v747, %v759
    %s769 = scalar_lea.vmem %s4, 24
    %v770 = vld [vmem:[%s769] sm:$0xf]
    %v772 = vlaneseq
    %v773 = vshrl.u32 %v772, 7
    %v774 = vsub.s32 0, %v773
    %v775 = vrot.slane %v770, %v774
    %v776 = vlaneseq
    %v777 = vshrl.u32 %v776, 7
    %v778 = vsub.s32 1, %v777
    %v779 = vrot.slane %v770, %v778
    %v780 = vlaneseq
    %v781 = vshrl.u32 %v780, 7
    %v782 = vsub.s32 2, %v781
    %v783 = vrot.slane %v770, %v782
    %v784 = vlaneseq
    %v785 = vshrl.u32 %v784, 7
    %v786 = vsub.s32 3, %v785
    %v787 = vrot.slane %v770, %v786
    %v792 = vmul.f32 %v761, %v775
    %v793 = vmul.f32 %v762, %v779
    %v794 = vmul.f32 %v763, %v783
    %v795 = vmul.f32 %v764, %v787
    %v796 = vmul.f32 %v765, %v775
    %v797 = vmul.f32 %v766, %v779
    %v798 = vmul.f32 %v767, %v783
    %v799 = vmul.f32 %v768, %v787
    %v800 = vadd.f32 %v715, %v792
    %v801 = vadd.f32 %v716, %v793
    %v802 = vadd.f32 %v717, %v794
    %v803 = vadd.f32 %v718, %v795
    %v804 = vadd.f32 %v719, %v796
    %v805 = vadd.f32 %v720, %v797
    %v806 = vadd.f32 %v721, %v798
    %v807 = vadd.f32 %v722, %v799
    %808 = vrot.lane.b32.xlu0 %v269, 112
    %v809 = vpop.permute.xlu0 %808
    %810 = vrot.lane.b32.xlu0 %v273, 112
    %v811 = vpop.permute.xlu0 %810
    %812 = vrot.lane.b32.xlu0 %v270, 112
    %v813 = vpop.permute.xlu0 %812
    %814 = vrot.lane.b32.xlu0 %v274, 112
    %v815 = vpop.permute.xlu0 %814
    %816 = vrot.lane.b32.xlu0 %v271, 112
    %v817 = vpop.permute.xlu0 %816
    %818 = vrot.lane.b32.xlu0 %v275, 112
    %v819 = vpop.permute.xlu0 %818
    %820 = vrot.lane.b32.xlu0 %v272, 112
    %v821 = vpop.permute.xlu0 %820
    %822 = vrot.lane.b32.xlu0 %v276, 112
    %v823 = vpop.permute.xlu0 %822
    %vm824 = vcmp.lt.s32.totalorder %v315, 112
    %v825 = vsel %vm824, %v817, %v821
    %v826 = vsel %vm824, %v819, %v823
    %v827 = vsel %vm824, %v813, %v817
    %v828 = vsel %vm824, %v815, %v819
    %v829 = vsel %vm824, %v809, %v813
    %v830 = vsel %vm824, %v811, %v815
    %v831 = vsel %vm824, %v821, %v809
    %v832 = vsel %vm824, %v823, %v811
    %s833 = scalar_lea.vmem %s3, 112
    %v834 = vld [vmem:[%s833] sm:$0xff]
    %v835 = vld [vmem:[%s833 + $0x8] sm:$0xff]
    %837 = vset.pattern.permute.xlu0 0
    %838 = vperm.xlu0 %837, %v834
    %v839 = vpop.permute.xlu0 %838
    %842 = vset.pattern.permute.xlu0 0
    %843 = vperm.xlu0 %842, %v835
    %v844 = vpop.permute.xlu0 %843
    %v846 = vmul.f32 %v829, %v839
    %v847 = vmul.f32 %v827, %v839
    %v848 = vmul.f32 %v825, %v839
    %v849 = vmul.f32 %v831, %v839
    %v850 = vmul.f32 %v830, %v844
    %v851 = vmul.f32 %v828, %v844
    %v852 = vmul.f32 %v826, %v844
    %v853 = vmul.f32 %v832, %v844
    %s854 = scalar_lea.vmem %s4, 28
    %v855 = vld [vmem:[%s854] sm:$0xf]
    %v857 = vlaneseq
    %v858 = vshrl.u32 %v857, 7
    %v859 = vsub.s32 0, %v858
    %v860 = vrot.slane %v855, %v859
    %v861 = vlaneseq
    %v862 = vshrl.u32 %v861, 7
    %v863 = vsub.s32 1, %v862
    %v864 = vrot.slane %v855, %v863
    %v865 = vlaneseq
    %v866 = vshrl.u32 %v865, 7
    %v867 = vsub.s32 2, %v866
    %v868 = vrot.slane %v855, %v867
    %v869 = vlaneseq
    %v870 = vshrl.u32 %v869, 7
    %v871 = vsub.s32 3, %v870
    %v872 = vrot.slane %v855, %v871
    %v877 = vmul.f32 %v846, %v860
    %v878 = vmul.f32 %v847, %v864
    %v879 = vmul.f32 %v848, %v868
    %v880 = vmul.f32 %v849, %v872
    %v881 = vmul.f32 %v850, %v860
    %v882 = vmul.f32 %v851, %v864
    %v883 = vmul.f32 %v852, %v868
    %v884 = vmul.f32 %v853, %v872
    %v885 = vadd.f32 %v800, %v877
    %v886 = vadd.f32 %v801, %v878
    %v887 = vadd.f32 %v802, %v879
    %v888 = vadd.f32 %v803, %v880
    %v889 = vadd.f32 %v804, %v881
    %v890 = vadd.f32 %v805, %v882
    %v891 = vadd.f32 %v806, %v883
    %v892 = vadd.f32 %v807, %v884
    %893 = vrot.lane.b32.xlu0 %v269, 111
    %v894 = vpop.permute.xlu0 %893
    %895 = vrot.lane.b32.xlu0 %v273, 111
    %v896 = vpop.permute.xlu0 %895
    %897 = vrot.lane.b32.xlu0 %v270, 111
    %v898 = vpop.permute.xlu0 %897
    %899 = vrot.lane.b32.xlu0 %v274, 111
    %v900 = vpop.permute.xlu0 %899
    %901 = vrot.lane.b32.xlu0 %v271, 111
    %v902 = vpop.permute.xlu0 %901
    %903 = vrot.lane.b32.xlu0 %v275, 111
    %v904 = vpop.permute.xlu0 %903
    %905 = vrot.lane.b32.xlu0 %v272, 111
    %v906 = vpop.permute.xlu0 %905
    %907 = vrot.lane.b32.xlu0 %v276, 111
    %v908 = vpop.permute.xlu0 %907
    %vm909 = vcmp.lt.s32.totalorder %v315, 111
    %v910 = vsel %vm909, %v902, %v906
    %v911 = vsel %vm909, %v904, %v908
    %v912 = vsel %vm909, %v898, %v902
    %v913 = vsel %vm909, %v900, %v904
    %v914 = vsel %vm909, %v894, %v898
    %v915 = vsel %vm909, %v896, %v900
    %v916 = vsel %vm909, %v906, %v894
    %v917 = vsel %vm909, %v908, %v896
    %s918 = scalar_lea.vmem %s3, 128
    %v919 = vld [vmem:[%s918] sm:$0xff]
    %v920 = vld [vmem:[%s918 + $0x8] sm:$0xff]
    %922 = vset.pattern.permute.xlu0 0
    %923 = vperm.xlu0 %922, %v919
    %v924 = vpop.permute.xlu0 %923
    %927 = vset.pattern.permute.xlu0 0
    %928 = vperm.xlu0 %927, %v920
    %v929 = vpop.permute.xlu0 %928
    %v931 = vmul.f32 %v914, %v924
    %v932 = vmul.f32 %v912, %v924
    %v933 = vmul.f32 %v910, %v924
    %v934 = vmul.f32 %v916, %v924
    %v935 = vmul.f32 %v915, %v929
    %v936 = vmul.f32 %v913, %v929
    %v937 = vmul.f32 %v911, %v929
    %v938 = vmul.f32 %v917, %v929
    %s939 = scalar_lea.vmem %s4, 32
    %v940 = vld [vmem:[%s939] sm:$0xf]
    %v942 = vlaneseq
    %v943 = vshrl.u32 %v942, 7
    %v944 = vsub.s32 0, %v943
    %v945 = vrot.slane %v940, %v944
    %v946 = vlaneseq
    %v947 = vshrl.u32 %v946, 7
    %v948 = vsub.s32 1, %v947
    %v949 = vrot.slane %v940, %v948
    %v950 = vlaneseq
    %v951 = vshrl.u32 %v950, 7
    %v952 = vsub.s32 2, %v951
    %v953 = vrot.slane %v940, %v952
    %v954 = vlaneseq
    %v955 = vshrl.u32 %v954, 7
    %v956 = vsub.s32 3, %v955
    %v957 = vrot.slane %v940, %v956
    %v962 = vmul.f32 %v931, %v945
    %v963 = vmul.f32 %v932, %v949
    %v964 = vmul.f32 %v933, %v953
    %v965 = vmul.f32 %v934, %v957
    %v966 = vmul.f32 %v935, %v945
    %v967 = vmul.f32 %v936, %v949
    %v968 = vmul.f32 %v937, %v953
    %v969 = vmul.f32 %v938, %v957
    %v970 = vadd.f32 %v885, %v962
    %v971 = vadd.f32 %v886, %v963
    %v972 = vadd.f32 %v887, %v964
    %v973 = vadd.f32 %v888, %v965
    %v974 = vadd.f32 %v889, %v966
    %v975 = vadd.f32 %v890, %v967
    %v976 = vadd.f32 %v891, %v968
    %v977 = vadd.f32 %v892, %v969
    %v978 = vld [vmem:[%s5] sm:$0xff]
    %v979 = vld [vmem:[%s5 + $0x8] sm:$0xff]
    %981 = vset.pattern.permute.xlu0 0
    %982 = vperm.xlu0 %981, %v978
    %v983 = vpop.permute.xlu0 %982
    %986 = vset.pattern.permute.xlu0 0
    %987 = vperm.xlu0 %986, %v979
    %v988 = vpop.permute.xlu0 %987
    %v990 = vadd.f32 %v970, %v983
    %v991 = vadd.f32 %v971, %v983
    %v992 = vadd.f32 %v972, %v983
    %v993 = vadd.f32 %v973, %v983
    %v994 = vadd.f32 %v974, %v988
    %v995 = vadd.f32 %v975, %v988
    %v996 = vadd.f32 %v976, %v988
    %v997 = vadd.f32 %v977, %v988
    %v998 = vxor.u32 %v990, 2147483648
    %v999 = vxor.u32 %v991, 2147483648
    %v1000 = vxor.u32 %v992, 2147483648
    %v1001 = vxor.u32 %v993, 2147483648
    %v1002 = vxor.u32 %v994, 2147483648
    %v1003 = vxor.u32 %v995, 2147483648
    %v1004 = vxor.u32 %v996, 2147483648
    %v1005 = vxor.u32 %v997, 2147483648
    %v1006 = vmul.f32 %v998, 1.442695
    %v1007 = vpow.pop %v1006
    %v1008 = vmul.f32 %v999, 1.442695
    %v1009 = vpow.pop %v1008
    %v1010 = vmul.f32 %v1000, 1.442695
    %v1011 = vpow.pop %v1010
    %v1012 = vmul.f32 %v1001, 1.442695
    %v1013 = vpow.pop %v1012
    %v1014 = vmul.f32 %v1002, 1.442695
    %v1015 = vpow.pop %v1014
    %v1016 = vmul.f32 %v1003, 1.442695
    %v1017 = vpow.pop %v1016
    %v1018 = vmul.f32 %v1004, 1.442695
    %v1019 = vpow.pop %v1018
    %v1020 = vmul.f32 %v1005, 1.442695
    %v1021 = vpow.pop %v1020
    %v1022 = vadd.f32 %v1007, 1.0
    %v1023 = vadd.f32 %v1009, 1.0
    %v1024 = vadd.f32 %v1011, 1.0
    %v1025 = vadd.f32 %v1013, 1.0
    %v1026 = vadd.f32 %v1015, 1.0
    %v1027 = vadd.f32 %v1017, 1.0
    %v1028 = vadd.f32 %v1019, 1.0
    %v1029 = vadd.f32 %v1021, 1.0
    %v1030 = vrcp.pop %v1022
    %v1031 = vmul.f32 1.0, %v1030
    %v1032 = vrcp.pop %v1023
    %v1033 = vmul.f32 1.0, %v1032
    %v1034 = vrcp.pop %v1024
    %v1035 = vmul.f32 1.0, %v1034
    %v1036 = vrcp.pop %v1025
    %v1037 = vmul.f32 1.0, %v1036
    %v1038 = vrcp.pop %v1026
    %v1039 = vmul.f32 1.0, %v1038
    %v1040 = vrcp.pop %v1027
    %v1041 = vmul.f32 1.0, %v1040
    %v1042 = vrcp.pop %v1028
    %v1043 = vmul.f32 1.0, %v1042
    %v1044 = vrcp.pop %v1029
    %v1045 = vmul.f32 1.0, %v1044
    %v1046 = vmul.f32 %v990, %v1031
    %v1047 = vmul.f32 %v991, %v1033
    %v1048 = vmul.f32 %v992, %v1035
    %v1049 = vmul.f32 %v993, %v1037
    %v1050 = vmul.f32 %v994, %v1039
    %v1051 = vmul.f32 %v995, %v1041
    %v1052 = vmul.f32 %v996, %v1043
    %v1053 = vmul.f32 %v997, %v1045
    %v1054 = vld [vmem:[%s6] sm:$0xff]
    %v1055 = vld [vmem:[%s6 + $0x8] sm:$0xff]
    %v1056 = vld [vmem:[%s7] sm:$0x1]
    %v1057 = vld [vmem:[%s8] sm:$0xff]
    %v1058 = vld [vmem:[%s8 + $0x8] sm:$0xff]
    %v1059 = vld [vmem:[%s9] sm:$0xff]
    %v1060 = vld [vmem:[%s9 + $0x8] sm:$0xff]
    %v1061 = vadd.f32 %v1046, %v1047
    %1062 = vadd.xlane.f32.xlu0 %v1061
    %v1063 = vpop.xlane.xlu0 %1062
    %v1064 = vadd.f32 %v1050, %v1051
    %1065 = vadd.xlane.f32.xlu0 %v1064
    %v1066 = vpop.xlane.xlu0 %1065
    %v1067 = vrcp.pop 256.0
    %v1068 = vmul.f32 %v1063, %v1067
    %v1069 = vmul.f32 %v1066, %v1067
    %v1070 = vmul.f32 %v1054, %v1068
    %v1071 = vmul.f32 %v1055, %v1069
    %vm1072 = vcmask 15360
    %v1073 = vsel %vm1072, %v1070, 0.0
    %v1074 = vsel %vm1072, %v1071, 0.0
    %v1075 = vadd.f32 %v1073, %v1074
    %v1076 = vrot.slane %v1075, 4
    %v1077 = vadd.f32 %v1075, %v1076
    %v1078 = vrot.slane %v1077, 2
    %v1079 = vadd.f32 %v1077, %v1078
    %v1080 = vrot.slane %v1079, 1
    %v1081 = vadd.f32 %v1079, %v1080
    %v1082 = vadd.f32 %v1081, %v1056
    %v1083 = vxor.u32 %v1082, 2147483648
    %v1084 = vmul.f32 %v1083, 1.442695
    %v1085 = vpow.pop %v1084
    %v1086 = vadd.f32 %v1085, 1.0
    %v1087 = vrcp.pop %v1086
    %v1088 = vmul.f32 1.0, %v1087
    %v1089 = vmul.f32 %v1082, %v1088
    %v1090 = vlaneseq
    %v1091 = vshrl.u32 %v1090, 7
    %v1092 = vsub.s32 0, %v1091
    %v1093 = vrot.slane %v1089, %v1092
    %v1094 = vmul.f32 %v1057, %v1093
    %v1095 = vmul.f32 %v1058, %v1093
    %v1096 = vsel %vm1072, %v1094, 0.0
    %1097 = vadd.xlane.f32.xlu0 %v1096
    %v1098 = vpop.xlane.xlu0 %1097
    %v1099 = vsel %vm1072, %v1095, 0.0
    %1100 = vadd.xlane.f32.xlu0 %v1099
    %v1101 = vpop.xlane.xlu0 %1100
    %v1102 = vadd.f32 %v1098, %v1059
    %v1103 = vadd.f32 %v1101, %v1060
    %v1104 = vxor.u32 %v1102, 2147483648
    %v1105 = vxor.u32 %v1103, 2147483648
    %v1106 = vmul.f32 %v1104, 1.442695
    %v1107 = vpow.pop %v1106
    %v1108 = vmul.f32 %v1105, 1.442695
    %v1109 = vpow.pop %v1108
    %v1110 = vadd.f32 %v1107, 1.0
    %v1111 = vadd.f32 %v1109, 1.0
    %v1112 = vrcp.pop %v1110
    %v1113 = vmul.f32 1.0, %v1112
    %v1114 = vrcp.pop %v1111
    %v1115 = vmul.f32 1.0, %v1114
    %1117 = vset.pattern.permute.xlu0 0
    %1118 = vperm.xlu0 %1117, %v1113
    %v1119 = vpop.permute.xlu0 %1118
    %1122 = vset.pattern.permute.xlu0 0
    %1123 = vperm.xlu0 %1122, %v1115
    %v1124 = vpop.permute.xlu0 %1123
    %v1126 = vmul.f32 %v1046, %v1119
    %v1127 = vmul.f32 %v1047, %v1119
    %v1128 = vmul.f32 %v1050, %v1124
    %v1129 = vmul.f32 %v1051, %v1124
    %v1130 = vadd.f32 %v1048, %v1049
    %1131 = vadd.xlane.f32.xlu0 %v1130
    %v1132 = vpop.xlane.xlu0 %1131
    %v1133 = vadd.f32 %v1052, %v1053
    %1134 = vadd.xlane.f32.xlu0 %v1133
    %v1135 = vpop.xlane.xlu0 %1134
    %v1136 = vmul.f32 %v1132, %v1067
    %v1137 = vmul.f32 %v1135, %v1067
    %v1138 = vmul.f32 %v1054, %v1136
    %v1139 = vmul.f32 %v1055, %v1137
    %v1140 = vsel %vm1072, %v1138, 0.0
    %v1141 = vsel %vm1072, %v1139, 0.0
    %v1142 = vadd.f32 %v1140, %v1141
    %v1143 = vrot.slane %v1142, 4
    %v1144 = vadd.f32 %v1142, %v1143
    %v1145 = vrot.slane %v1144, 2
    %v1146 = vadd.f32 %v1144, %v1145
    %v1147 = vrot.slane %v1146, 1
    %v1148 = vadd.f32 %v1146, %v1147
    %v1149 = vadd.f32 %v1148, %v1056
    %v1150 = vxor.u32 %v1149, 2147483648
    %v1151 = vmul.f32 %v1150, 1.442695
    %v1152 = vpow.pop %v1151
    %v1153 = vadd.f32 %v1152, 1.0
    %v1154 = vrcp.pop %v1153
    %v1155 = vmul.f32 1.0, %v1154
    %v1156 = vmul.f32 %v1149, %v1155
    %v1157 = vlaneseq
    %v1158 = vshrl.u32 %v1157, 7
    %v1159 = vsub.s32 0, %v1158
    %v1160 = vrot.slane %v1156, %v1159
    %v1161 = vmul.f32 %v1057, %v1160
    %v1162 = vmul.f32 %v1058, %v1160
    %v1163 = vsel %vm1072, %v1161, 0.0
    %1164 = vadd.xlane.f32.xlu0 %v1163
    %v1165 = vpop.xlane.xlu0 %1164
    %v1166 = vsel %vm1072, %v1162, 0.0
    %1167 = vadd.xlane.f32.xlu0 %v1166
    %v1168 = vpop.xlane.xlu0 %1167
    %v1169 = vadd.f32 %v1165, %v1059
    %v1170 = vadd.f32 %v1168, %v1060
    %v1171 = vxor.u32 %v1169, 2147483648
    %v1172 = vxor.u32 %v1170, 2147483648
    %v1173 = vmul.f32 %v1171, 1.442695
    %v1174 = vpow.pop %v1173
    %v1175 = vmul.f32 %v1172, 1.442695
    %v1176 = vpow.pop %v1175
    %v1177 = vadd.f32 %v1174, 1.0
    %v1178 = vadd.f32 %v1176, 1.0
    %v1179 = vrcp.pop %v1177
    %v1180 = vmul.f32 1.0, %v1179
    %v1181 = vrcp.pop %v1178
    %v1182 = vmul.f32 1.0, %v1181
    %1184 = vset.pattern.permute.xlu0 0
    %1185 = vperm.xlu0 %1184, %v1180
    %v1186 = vpop.permute.xlu0 %1185
    %1189 = vset.pattern.permute.xlu0 0
    %1190 = vperm.xlu0 %1189, %v1182
    %v1191 = vpop.permute.xlu0 %1190
    %v1193 = vmul.f32 %v1048, %v1186
    %v1194 = vmul.f32 %v1049, %v1186
    %v1195 = vmul.f32 %v1052, %v1191
    %v1196 = vmul.f32 %v1053, %v1191
    %v1197 = vld [vmem:[%s10] sm:$0xff]
    %v1198 = vld [vmem:[%s11] sm:$0xff]
    %1200 = vset.pattern.permute.xlu0 0
    %1201 = vperm.xlu0 %1200, %v1198
    %v1202 = vpop.permute.xlu0 %1201
    %vm1204 = vcmask 130048
    %v1206 = vsel %vm1204, %v1197, 0
    %1208 = vmatprep.subr.mxu0 %v1127
    %1209 = vmatpush1.msra.mxu0 %v1126
    %1210 = vmatprep.subr.mxu0 %v1129
    %1211 = vmatpush1.msra.mxu0 %v1128
    %1212 = vmatprep.subr.mxu0 0.0
    %1213 = vmatpush1.msra.mxu0 0.0
    %1214 = vmatprep.subr.mxu0 0.0
    %1215 = vmatpush1.msra.mxu0 0.0
    %1216 = vmatprep.subr.mxu0 0.0
    %1217 = vmatpush1.msra.mxu0 0.0
    %1218 = vmatprep.subr.mxu0 0.0
    %1219 = vmatpush1.msra.mxu0 0.0
    %1220 = vmatprep.subr.mxu0 0.0
    %1221 = vmatpush1.msra.mxu0 0.0
    %1222 = vmatprep.subr.mxu0 0.0
    %1223 = vmatpush1.msra.mxu0 0.0
    %1224 = vmatprep.subr.mxu0 0.0
    %1225 = vmatpush1.msra.mxu0 0.0
    %1226 = vmatprep.subr.mxu0 0.0
    %1227 = vmatpush1.msra.mxu0 0.0
    %1228 = vmatprep.subr.mxu0 0.0
    %1229 = vmatpush1.msra.mxu0 0.0
    %1230 = vmatprep.subr.mxu0 0.0
    %1231 = vmatpush1.msra.mxu0 0.0
    %1232 = vmatprep.subr.mxu0 0.0
    %1233 = vmatpush1.msra.mxu0 0.0
    %1234 = vmatprep.subr.mxu0 0.0
    %1235 = vmatpush1.msra.mxu0 0.0
    %1236 = vmatprep.subr.mxu0 0.0
    %1237 = vmatpush1.msra.mxu0 0.0
    %1238 = vmatprep.subr.mxu0 0.0
    %1239 = vmatpush1.msra.mxu0 0.0
    %1240 = vmatprep.subr.mxu0 0.0
    %1241 = vmatpush1.msra.mxu0 0.0
    %1242 = vmatprep.subr.mxu0 0.0
    %1243 = vmatpush1.msra.mxu0 0.0
    %1244 = vmatprep.subr.mxu0 0.0
    %1245 = vmatpush1.msra.mxu0 0.0
    %1246 = vmatprep.subr.mxu0 0.0
    %1247 = vmatpush1.msra.mxu0 0.0
    %1248 = vmatprep.subr.mxu0 0.0
    %1249 = vmatpush1.msra.mxu0 0.0
    %1250 = vmatprep.subr.mxu0 0.0
    %1251 = vmatpush1.msra.mxu0 0.0
    %1252 = vmatprep.subr.mxu0 0.0
    %1253 = vmatpush1.msra.mxu0 0.0
    %1254 = vmatprep.subr.mxu0 0.0
    %1255 = vmatpush1.msra.mxu0 0.0
    %1256 = vmatprep.subr.mxu0 0.0
    %1257 = vmatpush1.msra.mxu0 0.0
    %1258 = vmatprep.subr.mxu0 0.0
    %1259 = vmatpush1.msra.mxu0 0.0
    %1260 = vmatprep.subr.mxu0 0.0
    %1261 = vmatpush1.msra.mxu0 0.0
    %1262 = vmatprep.subr.mxu0 0.0
    %1263 = vmatpush1.msra.mxu0 0.0
    %1264 = vmatprep.subr.mxu0 0.0
    %1265 = vmatpush1.msra.mxu0 0.0
    %1266 = vmatprep.subr.mxu0 0.0
    %1267 = vmatpush1.msra.mxu0 0.0
    %1268 = vmatprep.subr.mxu0 0.0
    %1269 = vmatpush1.msra.mxu0 0.0
    %1270 = vmatprep.subr.mxu0 0.0
    %1271 = vmatpush1.msra.mxu0 0.0
    %1272 = vmatprep.mubr.f32.mxu0 0.0
    %1273 = vmatmul.mubr.f32.gmra.mrb[0].mxu0 %v1206
    %v1274 = vpop.f32.mrb[0].mxu0
    %v1275 = vadd.f32 %v1202, %v1274
    %v1276 = vpop.f32.mrb[0].mxu0
    %v1277 = vadd.f32 %v1202, %v1276
    %1278 = vdwg.mxu0
    %1279 = vmatprep.subr.mxu0 %v1194
    %1280 = vmatpush1.msra.mxu0 %v1193
    %1281 = vmatprep.subr.mxu0 %v1196
    %1282 = vmatpush1.msra.mxu0 %v1195
    %1283 = vmatprep.subr.mxu0 0.0
    %1284 = vmatpush1.msra.mxu0 0.0
    %1285 = vmatprep.subr.mxu0 0.0
    %1286 = vmatpush1.msra.mxu0 0.0
    %1287 = vmatprep.subr.mxu0 0.0
    %1288 = vmatpush1.msra.mxu0 0.0
    %1289 = vmatprep.subr.mxu0 0.0
    %1290 = vmatpush1.msra.mxu0 0.0
    %1291 = vmatprep.subr.mxu0 0.0
    %1292 = vmatpush1.msra.mxu0 0.0
    %1293 = vmatprep.subr.mxu0 0.0
    %1294 = vmatpush1.msra.mxu0 0.0
    %1295 = vmatprep.subr.mxu0 0.0
    %1296 = vmatpush1.msra.mxu0 0.0
    %1297 = vmatprep.subr.mxu0 0.0
    %1298 = vmatpush1.msra.mxu0 0.0
    %1299 = vmatprep.subr.mxu0 0.0
    %1300 = vmatpush1.msra.mxu0 0.0
    %1301 = vmatprep.subr.mxu0 0.0
    %1302 = vmatpush1.msra.mxu0 0.0
    %1303 = vmatprep.subr.mxu0 0.0
    %1304 = vmatpush1.msra.mxu0 0.0
    %1305 = vmatprep.subr.mxu0 0.0
    %1306 = vmatpush1.msra.mxu0 0.0
    %1307 = vmatprep.subr.mxu0 0.0
    %1308 = vmatpush1.msra.mxu0 0.0
    %1309 = vmatprep.subr.mxu0 0.0
    %1310 = vmatpush1.msra.mxu0 0.0
    %1311 = vmatprep.subr.mxu0 0.0
    %1312 = vmatpush1.msra.mxu0 0.0
    %1313 = vmatprep.subr.mxu0 0.0
    %1314 = vmatpush1.msra.mxu0 0.0
    %1315 = vmatprep.subr.mxu0 0.0
    %1316 = vmatpush1.msra.mxu0 0.0
    %1317 = vmatprep.subr.mxu0 0.0
    %1318 = vmatpush1.msra.mxu0 0.0
    %1319 = vmatprep.subr.mxu0 0.0
    %1320 = vmatpush1.msra.mxu0 0.0
    %1321 = vmatprep.subr.mxu0 0.0
    %1322 = vmatpush1.msra.mxu0 0.0
    %1323 = vmatprep.subr.mxu0 0.0
    %1324 = vmatpush1.msra.mxu0 0.0
    %1325 = vmatprep.subr.mxu0 0.0
    %1326 = vmatpush1.msra.mxu0 0.0
    %1327 = vmatprep.subr.mxu0 0.0
    %1328 = vmatpush1.msra.mxu0 0.0
    %1329 = vmatprep.subr.mxu0 0.0
    %1330 = vmatpush1.msra.mxu0 0.0
    %1331 = vmatprep.subr.mxu0 0.0
    %1332 = vmatpush1.msra.mxu0 0.0
    %1333 = vmatprep.subr.mxu0 0.0
    %1334 = vmatpush1.msra.mxu0 0.0
    %1335 = vmatprep.subr.mxu0 0.0
    %1336 = vmatpush1.msra.mxu0 0.0
    %1337 = vmatprep.subr.mxu0 0.0
    %1338 = vmatpush1.msra.mxu0 0.0
    %1339 = vmatprep.subr.mxu0 0.0
    %1340 = vmatpush1.msra.mxu0 0.0
    %1341 = vmatprep.subr.mxu0 0.0
    %1342 = vmatpush1.msra.mxu0 0.0
    %1343 = vmatprep.mubr.f32.mxu0 0.0
    %1344 = vmatmul.mubr.f32.gmra.mrb[0].mxu0 %v1206
    %v1345 = vpop.f32.mrb[0].mxu0
    %v1346 = vadd.f32 %v1202, %v1345
    %v1347 = vpop.f32.mrb[0].mxu0
    %v1348 = vadd.f32 %v1202, %v1347
    %1349 = vdwg.mxu0
    %v1350 = vadd.f32 %v1275, %v42
    %v1351 = vadd.f32 %v1277, %v43
    %v1352 = vadd.f32 %v1346, %v44
    %v1353 = vadd.f32 %v1348, %v45
    %1354 = vst [vmem:[#allocation2] sm:$0xff] %v1350
    %1355 = vst [vmem:[#allocation2 + $0x8] sm:$0xff] %v1351
    %1356 = vst [vmem:[#allocation2 + $0x10] sm:$0xff] %v1352
    %1357 = vst [vmem:[#allocation2 + $0x18] sm:$0xff] %v1353
    // Predicated region
    $region50: #{tpu_custom_call.1} parent=1 // pred_check
      _
    $region51: #{tpu_custom_call.1} parent=1 // pred_check_branch
      %1359 = sbr.rel (0) target = $region53
    $region52: #{tpu_custom_call.1} parent=1 // pred_region
      %s1361 = ssub.s32 512, 512
      %1362 = vsyncadd [#allocation3], %s1361
      %s1364 = sshll.u32 [#allocation2], 4
      %s1365 = int_to_ptr.vmem [resolvable:$true] %s1364
      %1367 = dma.vmem_to_hbm [thread:$0]  %s1365, 512, %s12, [#allocation3]
    $region53: #{tpu_custom_call.1} parent=1 // pred_fallthru
      _
    // Predicated region
    $region54: #{tpu_custom_call.1} parent=1 // pred_check
      _
    $region55: #{tpu_custom_call.1} parent=1 // pred_check_branch
      %1369 = sbr.rel (0) target = $region57
    $region56: #{tpu_custom_call.1} parent=1 // pred_region
      %1370 = dma.done [#allocation3], 512
    $region57: #{tpu_custom_call.1} parent=1 // pred_fallthru
      _
    %1371 = vsyncpa [#allocation3], 1

</llo_original>
